<compile_context>
chip_gen: v5e
topology: v5e:2x2
jax: 0.10.0
libtpu: 0.0.40
codegen_flags: <defaults>
</compile_context>

<pallas_src>
import functools
import math

import numpy as np
import jax
import jax.numpy as jnp
from jax.experimental import pallas as pl
from jax.experimental.pallas import tpu as pltpu

_BN_EPS = 1e-5
_BN_SCALE = 1.0 / math.sqrt(1.0 + _BN_EPS)  # eval-mode, default-init BatchNorm2d


# ----------------------------------------------------------------------------
# Fused Pallas kernel: entire CILModel forward, all operands resident in VMEM.
# ----------------------------------------------------------------------------
def _cil_fused_kernel(x_ref, a_ref,
                      a1_ref, a2_ref, wf_ref, wm_ref,
                      wjx_ref, wjm_ref, wb1_ref, wb2_ref,
                      bias_ref, o_ref):
    dot = functools.partial(jnp.dot, preferred_element_type=jnp.float32)
    relu = lambda v: jnp.maximum(v, 0.0)
    # packed bias rows: 0=conv1, 1=conv2, 2=perception_fc, 3=measurements_fc,
    #                   4=join_fc, 5=branch_hidden, 6=branch_out
    bias = lambda row, n: bias_ref[row:row + 1, :n]       # static slice -> view

    # conv1 (+ folded BN + bias) + ReLU  -- im2col gather folded into a1
    h = relu(dot(x_ref[...], a1_ref[...]) + bias(0, a1_ref.shape[1]))
    # conv2 (+ folded BN + bias) + ReLU
    h = relu(dot(h, a2_ref[...]) + bias(1, a2_ref.shape[1]))
    # perception FC (end_layer=False -> ReLU)
    feat = relu(dot(h, wf_ref[...]) + bias(2, wf_ref.shape[1]))
    # measurements FC: K == 1 -> VPU broadcast multiply-add, skip the MXU
    m = relu(a_ref[...] * wm_ref[...] + bias(3, wm_ref.shape[1]))
    # Join (mode='cat') folded into a split matmul + after_process FC
    j = relu(dot(feat, wjx_ref[...]) + dot(m, wjm_ref[...]) + bias(4, wjx_ref.shape[1]))
    # branch 0: hidden FC (ReLU) then end layer (no ReLU)
    hb = relu(dot(j, wb1_ref[...]) + bias(5, wb1_ref.shape[1]))
    o_ref[...] = (dot(hb, wb2_ref[...]) + bias(6, wb2_ref.shape[1])).astype(o_ref.dtype)


def cil_forward(params, x, a):
    """CILModel.forward: x (B, 3, 16, 16) NCHW, a (B, len(INPUTS)) -> (B, len(TARGETS))."""
    B = x.shape[0]
    p = params
    x_flat = x.reshape(B, -1).astype(jnp.float32)   # NCHW flatten; A1 rows are 'chw'-ordered

    args = (
        x_flat, a.astype(jnp.float32),
        p['A1'], p['A2'], p['w_fc'], p['w_m'],
        p['w_j_x'], p['w_j_m'], p['w_br1'], p['w_br2'],
        p['biases'],
    )

    n_targets = p['w_br2'].shape[1]
    flops = 2 * B * sum(int(np.prod(p[k].shape)) for k in
                        ('A1', 'A2', 'w_fc', 'w_m', 'w_j_x', 'w_j_m', 'w_br1', 'w_br2'))
    bytes_accessed = sum(int(np.prod(v.shape)) * 4 for v in args) + B * n_targets * 4

    vmem = pl.BlockSpec(memory_space=pltpu.MemorySpace.VMEM)
    return pl.pallas_call(
        _cil_fused_kernel,
        out_shape=jax.ShapeDtypeStruct((B, n_targets), jnp.float32),
        in_specs=[vmem] * len(args),
        out_specs=vmem,
        cost_estimate=pl.CostEstimate(flops=flops, transcendentals=0,
                                      bytes_accessed=bytes_accessed),
    )(*args)


# ----------------------------------------------------------------------------
# Host-side packing: fold im2col + BatchNorm into dense conv matrices.
# ----------------------------------------------------------------------------
def _conv_as_dense(w_oihw, in_chw, stride, in_order):
    """Fold the VALID-conv im2col gather into the weights.

    Returns A of shape (Cin*H*W, Ho*Wo*Cout) such that, for inputs flattened in
    `in_order` ('chw' or 'hwc') feature order,
        (x_flat @ A)[:, (ho*Wo + wo)*Cout + co] == conv2d(x, w)[co, ho, wo].
    """
    w = np.asarray(w_oihw, np.float32)
    Cout, Cin, KH, KW = w.shape
    C, H, W = in_chw
    assert C == Cin
    Ho = (H - KH) // stride + 1
    Wo = (W - KW) // stride + 1
    A = np.zeros((C * H * W, Ho * Wo * Cout), np.float32)
    co, ci, ki, kj, ho, wo = [g.ravel() for g in np.indices((Cout, Cin, KH, KW, Ho, Wo))]
    hi = ho * stride + ki
    wi = wo * stride + kj
    if in_order == 'chw':
        rows = ci * (H * W) + hi * W + wi
    else:  # 'hwc' (channels-last activations between conv layers)
        rows = hi * (W * C) + wi * C + ci
    cols = (ho * Wo + wo) * Cout + co
    A[rows, cols] = w[co, ci, ki, kj]
    return A, (Cout, Ho, Wo)


def pack_params(raw):
    """Turn torch-style parameters into the fused kernel's operand set."""
    p = {}
    biases = []                                            # row order == kernel bias rows
    cur = (3, 16, 16)
    dense = []
    for li, (w, b, s) in enumerate(raw['conv']):
        order = 'chw' if li == 0 else 'hwc'
        A, (co, ho, wo) = _conv_as_dense(np.asarray(w) * _BN_SCALE, cur, s, order)
        dense.append(jnp.asarray(A))
        biases.append(np.tile(np.asarray(b) * _BN_SCALE, ho * wo))
        cur = (co, ho, wo)
    p['A1'], p['A2'] = dense
    C2, H2, W2 = cur                                       # (16, 3, 3) -> 144 features

    # perception FC: permute rows hwc <- chw so it matches torch's NCHW .view()
    (w_fc, b_fc), = raw['perception_fc']
    h, wv, c = [g.ravel() for g in np.indices((H2, W2, C2))]
    perm = c * (H2 * W2) + h * W2 + wv                     # perm[hwc_flat] = chw_flat
    p['w_fc'] = jnp.asarray(np.asarray(w_fc)[perm, :])
    biases.append(np.asarray(b_fc))

    (w_m, b_m), = raw['measurements_fc']
    p['w_m'] = jnp.asarray(np.asarray(w_m).reshape(1, -1))
    biases.append(np.asarray(b_m))

    (w_j, b_j), = raw['join_fc']
    n_per = w_fc.shape[1]
    p['w_j_x'] = jnp.asarray(np.asarray(w_j)[:n_per])      # cat((x, m), 1): x rows first
    p['w_j_m'] = jnp.asarray(np.asarray(w_j)[n_per:])
    biases.append(np.asarray(b_j))

    (w_b1, b_b1), (w_b2, b_b2) = raw['branch_fc']
    p['w_br1'] = jnp.asarray(np.asarray(w_b1))
    biases.append(np.asarray(b_b1))
    p['w_br2'] = jnp.asarray(np.asarray(w_b2))
    biases.append(np.asarray(b_b2))

    # Pack all 7 bias vectors into one lane-aligned (8, W) operand -> one DMA.
    width = max(int(b.size) for b in biases)
    width = ((width + 127) // 128) * 128
    pack = np.zeros((8, width), np.float32)
    for i, b in enumerate(biases):
        pack[i, :b.size] = b.astype(np.float32)
    p['biases'] = jnp.asarray(pack)
    return p


# ----------------------------------------------------------------------------
# Parameter init (xavier_uniform weights, bias = 0.1, like the module __init__)
# ----------------------------------------------------------------------------
def _xavier_uniform(key, shape, fan_in, fan_out):
    bound = math.sqrt(6.0 / (fan_in + fan_out))
    return jax.random.uniform(key, shape, jnp.float32, -bound, bound)


def init_raw_params(key):
    keys = iter(jax.random.split(key, 16))
    raw = {}

    # perception conv: channels [3, 8, 16], kernels [3, 3], strides [2, 2]
    raw['conv'] = []
    for cin, cout, k, s in [(3, 8, 3, 2), (8, 16, 3, 2)]:
        w = _xavier_uniform(next(keys), (cout, cin, k, k), cin * k * k, cout * k * k)
        raw['conv'].append((w, jnp.full((cout,), 0.1, jnp.float32), s))

    def fc_stack(sizes):
        layers = []
        for i in range(len(sizes) - 1):
            w = _xavier_uniform(next(keys), (sizes[i], sizes[i + 1]), sizes[i], sizes[i + 1])
            layers.append((w, jnp.full((sizes[i + 1],), 0.1, jnp.float32)))
        return layers

    # conv output for 16x16 input: 16 -> 7 -> 3 spatial, 16 channels => 144
    raw['perception_fc'] = fc_stack([144, 32])      # perception['fc']['neurons'] = [32]
    raw['measurements_fc'] = fc_stack([1, 16])      # len(INPUTS)=1 -> [16]
    raw['join_fc'] = fc_stack([32 + 16, 32])        # join['fc']['neurons'] = [32]
    raw['branch_fc'] = fc_stack([32, 32, 2])        # branches fc [32] + len(TARGETS)=2
    return raw


# ----------------------------------------------------------------------------
# Pure-JAX reference (mirrors the PyTorch graph) for correctness checking.
# ----------------------------------------------------------------------------
def cil_reference(raw, x, a):
    hi = jax.lax.Precision.HIGHEST
    dot = functools.partial(jnp.dot, precision=hi)
    h = x
    for w, b, s in raw['conv']:
        h = jax.lax.conv_general_dilated(h, w, (s, s), 'VALID',
                                         dimension_numbers=('NCHW', 'OIHW', 'NCHW'),
                                         precision=hi)
        h = jnp.maximum((h + b[None, :, None, None]) * _BN_SCALE, 0.0)
    feat = h.reshape(h.shape[0], -1)
    for w, b in raw['perception_fc']:
        feat = jnp.maximum(dot(feat, w) + b, 0.0)
    m = a
    for w, b in raw['measurements_fc']:
        m = jnp.maximum(dot(m, w) + b, 0.0)
    j = jnp.concatenate([feat, m], axis=1)
    for w, b in raw['join_fc']:
        j = jnp.maximum(dot(j, w) + b, 0.0)
    out = j
    n = len(raw['branch_fc'])
    for i, (w, b) in enumerate(raw['branch_fc']):
        out = dot(out, w) + b
        if i < n - 1:
            out = jnp.maximum(out, 0.0)
    return out


if __name__ == "__main__":
    key = jax.random.PRNGKey(0)
    kx, ka, kp = jax.random.split(key, 3)

    B = 2
    x = jax.random.normal(kx, (B, 3, 16, 16), dtype=jnp.float32)   # SENSORS: 3ch 16x16, 1 frame
    a = jax.random.normal(ka, (B, 1), dtype=jnp.float32)           # len(INPUTS) = 1 (speed)

    raw = init_raw_params(kp)
    params = pack_params(raw)

    fwd = jax.jit(cil_forward)
    out = jax.block_until_ready(fwd(params, x, a))

    assert out.shape == (B, 2), out.shape                          # len(TARGETS) = 2
    assert bool(jnp.all(jnp.isfinite(out)))

    ref = cil_reference(raw, x, a)
    assert bool(jnp.allclose(out, ref, rtol=2e-2, atol=2e-2)), (out, ref)
    print("KERNEL_OK")
</pallas_src>

<mosaic_0001>
module attributes {stable_mosaic.version = 11 : i64} {
  func.func @_cil_fused_kernel(%arg0: memref<2x768xf32, #tpu.memory_space<vmem>>, %arg1: memref<2x1xf32, #tpu.memory_space<vmem>>, %arg2: memref<768x392xf32, #tpu.memory_space<vmem>>, %arg3: memref<392x144xf32, #tpu.memory_space<vmem>>, %arg4: memref<144x32xf32, #tpu.memory_space<vmem>>, %arg5: memref<1x16xf32, #tpu.memory_space<vmem>>, %arg6: memref<32x32xf32, #tpu.memory_space<vmem>>, %arg7: memref<16x32xf32, #tpu.memory_space<vmem>>, %arg8: memref<32x32xf32, #tpu.memory_space<vmem>>, %arg9: memref<32x2xf32, #tpu.memory_space<vmem>>, %arg10: memref<8x512xf32, #tpu.memory_space<vmem>>, %arg11: memref<2x2xf32, #tpu.memory_space<vmem>>) attributes {dimension_semantics = [], scalar_prefetch = 0 : i64, scratch_operands = 0 : i64, tpu.core_type = #tpu.core_type<tc>} {
    %c0 = arith.constant 0 : index
    %c0_0 = arith.constant 0 : index
    %0 = vector.load %arg0[%c0, %c0_0] : memref<2x768xf32, #tpu.memory_space<vmem>>, vector<2x768xf32>
    %c0_1 = arith.constant 0 : index
    %c0_2 = arith.constant 0 : index
    %1 = vector.load %arg2[%c0_1, %c0_2] : memref<768x392xf32, #tpu.memory_space<vmem>>, vector<768x392xf32>
    %cst = arith.constant dense<0.000000e+00> : vector<2x392xf32>
    %2 = tpu.matmul %0, %1, %cst {dimension_numbers = #tpu.dot_dimension_numbers<[1], [0], [0], [1], [0, 0, 1, 1], [], []>} : vector<2x768xf32>, vector<768x392xf32>, vector<2x392xf32> -> vector<2x392xf32>
    %c0_3 = arith.constant 0 : index
    %c0_4 = arith.constant 0 : index
    %3 = vector.load %arg10[%c0_3, %c0_4] : memref<8x512xf32, #tpu.memory_space<vmem>>, vector<1x392xf32>
    %4 = vector.broadcast %3 : vector<1x392xf32> to vector<2x392xf32>
    %5 = arith.addf %2, %4 : vector<2x392xf32>
    %cst_5 = arith.constant 0.000000e+00 : f32
    %6 = vector.broadcast %cst_5 : f32 to vector<2x392xf32>
    %7 = arith.maximumf %5, %6 : vector<2x392xf32>
    %c0_6 = arith.constant 0 : index
    %c0_7 = arith.constant 0 : index
    %8 = vector.load %arg3[%c0_6, %c0_7] : memref<392x144xf32, #tpu.memory_space<vmem>>, vector<392x144xf32>
    %cst_8 = arith.constant dense<0.000000e+00> : vector<2x144xf32>
    %9 = tpu.matmul %7, %8, %cst_8 {dimension_numbers = #tpu.dot_dimension_numbers<[1], [0], [0], [1], [0, 0, 1, 1], [], []>} : vector<2x392xf32>, vector<392x144xf32>, vector<2x144xf32> -> vector<2x144xf32>
    %c1 = arith.constant 1 : index
    %c0_9 = arith.constant 0 : index
    %10 = vector.load %arg10[%c1, %c0_9] : memref<8x512xf32, #tpu.memory_space<vmem>>, vector<1x144xf32>
    %11 = vector.broadcast %10 : vector<1x144xf32> to vector<2x144xf32>
    %12 = arith.addf %9, %11 : vector<2x144xf32>
    %cst_10 = arith.constant 0.000000e+00 : f32
    %13 = vector.broadcast %cst_10 : f32 to vector<2x144xf32>
    %14 = arith.maximumf %12, %13 : vector<2x144xf32>
    %c0_11 = arith.constant 0 : index
    %c0_12 = arith.constant 0 : index
    %15 = vector.load %arg4[%c0_11, %c0_12] : memref<144x32xf32, #tpu.memory_space<vmem>>, vector<144x32xf32>
    %cst_13 = arith.constant dense<0.000000e+00> : vector<2x32xf32>
    %16 = tpu.matmul %14, %15, %cst_13 {dimension_numbers = #tpu.dot_dimension_numbers<[1], [0], [0], [1], [0, 0, 1, 1], [], []>} : vector<2x144xf32>, vector<144x32xf32>, vector<2x32xf32> -> vector<2x32xf32>
    %c2 = arith.constant 2 : index
    %c0_14 = arith.constant 0 : index
    %17 = vector.load %arg10[%c2, %c0_14] : memref<8x512xf32, #tpu.memory_space<vmem>>, vector<1x32xf32>
    %18 = vector.broadcast %17 : vector<1x32xf32> to vector<2x32xf32>
    %19 = arith.addf %16, %18 : vector<2x32xf32>
    %cst_15 = arith.constant 0.000000e+00 : f32
    %20 = vector.broadcast %cst_15 : f32 to vector<2x32xf32>
    %21 = arith.maximumf %19, %20 : vector<2x32xf32>
    %c0_16 = arith.constant 0 : index
    %c0_17 = arith.constant 0 : index
    %22 = vector.load %arg1[%c0_16, %c0_17] : memref<2x1xf32, #tpu.memory_space<vmem>>, vector<2x1xf32>
    %c0_18 = arith.constant 0 : index
    %c0_19 = arith.constant 0 : index
    %23 = vector.load %arg5[%c0_18, %c0_19] : memref<1x16xf32, #tpu.memory_space<vmem>>, vector<1x16xf32>
    %24 = vector.broadcast %22 : vector<2x1xf32> to vector<2x16xf32>
    %25 = vector.broadcast %23 : vector<1x16xf32> to vector<2x16xf32>
    %26 = arith.mulf %24, %25 : vector<2x16xf32>
    %c3 = arith.constant 3 : index
    %c0_20 = arith.constant 0 : index
    %27 = vector.load %arg10[%c3, %c0_20] : memref<8x512xf32, #tpu.memory_space<vmem>>, vector<1x16xf32>
    %28 = vector.broadcast %27 : vector<1x16xf32> to vector<2x16xf32>
    %29 = arith.addf %26, %28 : vector<2x16xf32>
    %cst_21 = arith.constant 0.000000e+00 : f32
    %30 = vector.broadcast %cst_21 : f32 to vector<2x16xf32>
    %31 = arith.maximumf %29, %30 : vector<2x16xf32>
    %c0_22 = arith.constant 0 : index
    %c0_23 = arith.constant 0 : index
    %32 = vector.load %arg6[%c0_22, %c0_23] : memref<32x32xf32, #tpu.memory_space<vmem>>, vector<32x32xf32>
    %cst_24 = arith.constant dense<0.000000e+00> : vector<2x32xf32>
    %33 = tpu.matmul %21, %32, %cst_24 {dimension_numbers = #tpu.dot_dimension_numbers<[1], [0], [0], [1], [0, 0, 1, 1], [], []>} : vector<2x32xf32>, vector<32x32xf32>, vector<2x32xf32> -> vector<2x32xf32>
    %c0_25 = arith.constant 0 : index
    %c0_26 = arith.constant 0 : index
    %34 = vector.load %arg7[%c0_25, %c0_26] : memref<16x32xf32, #tpu.memory_space<vmem>>, vector<16x32xf32>
    %cst_27 = arith.constant dense<0.000000e+00> : vector<2x32xf32>
    %35 = tpu.matmul %31, %34, %cst_27 {dimension_numbers = #tpu.dot_dimension_numbers<[1], [0], [0], [1], [0, 0, 1, 1], [], []>} : vector<2x16xf32>, vector<16x32xf32>, vector<2x32xf32> -> vector<2x32xf32>
    %36 = arith.addf %33, %35 : vector<2x32xf32>
    %c4 = arith.constant 4 : index
    %c0_28 = arith.constant 0 : index
    %37 = vector.load %arg10[%c4, %c0_28] : memref<8x512xf32, #tpu.memory_space<vmem>>, vector<1x32xf32>
    %38 = vector.broadcast %37 : vector<1x32xf32> to vector<2x32xf32>
    %39 = arith.addf %36, %38 : vector<2x32xf32>
    %cst_29 = arith.constant 0.000000e+00 : f32
    %40 = vector.broadcast %cst_29 : f32 to vector<2x32xf32>
    %41 = arith.maximumf %39, %40 : vector<2x32xf32>
    %c0_30 = arith.constant 0 : index
    %c0_31 = arith.constant 0 : index
    %42 = vector.load %arg8[%c0_30, %c0_31] : memref<32x32xf32, #tpu.memory_space<vmem>>, vector<32x32xf32>
    %cst_32 = arith.constant dense<0.000000e+00> : vector<2x32xf32>
    %43 = tpu.matmul %41, %42, %cst_32 {dimension_numbers = #tpu.dot_dimension_numbers<[1], [0], [0], [1], [0, 0, 1, 1], [], []>} : vector<2x32xf32>, vector<32x32xf32>, vector<2x32xf32> -> vector<2x32xf32>
    %c5 = arith.constant 5 : index
    %c0_33 = arith.constant 0 : index
    %44 = vector.load %arg10[%c5, %c0_33] : memref<8x512xf32, #tpu.memory_space<vmem>>, vector<1x32xf32>
    %45 = vector.broadcast %44 : vector<1x32xf32> to vector<2x32xf32>
    %46 = arith.addf %43, %45 : vector<2x32xf32>
    %cst_34 = arith.constant 0.000000e+00 : f32
    %47 = vector.broadcast %cst_34 : f32 to vector<2x32xf32>
    %48 = arith.maximumf %46, %47 : vector<2x32xf32>
    %c0_35 = arith.constant 0 : index
    %c0_36 = arith.constant 0 : index
    %49 = vector.load %arg9[%c0_35, %c0_36] : memref<32x2xf32, #tpu.memory_space<vmem>>, vector<32x2xf32>
    %cst_37 = arith.constant dense<0.000000e+00> : vector<2x2xf32>
    %50 = tpu.matmul %48, %49, %cst_37 {dimension_numbers = #tpu.dot_dimension_numbers<[1], [0], [0], [1], [0, 0, 1, 1], [], []>} : vector<2x32xf32>, vector<32x2xf32>, vector<2x2xf32> -> vector<2x2xf32>
    %c6 = arith.constant 6 : index
    %c0_38 = arith.constant 0 : index
    %51 = vector.load %arg10[%c6, %c0_38] : memref<8x512xf32, #tpu.memory_space<vmem>>, vector<1x2xf32>
    %52 = vector.broadcast %51 : vector<1x2xf32> to vector<2x2xf32>
    %53 = arith.addf %50, %52 : vector<2x2xf32>
    %c0_39 = arith.constant 0 : index
    %c0_40 = arith.constant 0 : index
    %54 = vector.load %arg11[%c0_39, %c0_40] : memref<2x2xf32, #tpu.memory_space<vmem>>, vector<2x2xf32>
    tpu.vector_store %arg11[%c0_39, %c0_40], %53 {strides = array<i32>} : memref<2x2xf32, #tpu.memory_space<vmem>>, vector<2x2xf32>,
    return
  }
}

</mosaic_0001>

<llo_original>
// kernel: cil_forward.1
$region0: #{cil_forward.1}
  #allocation0 [shape = 'u32[]', space=smem, size = 0x4, offset = 0x4, fixed_abs, tag = 'smem constant byte address 0x4 - core index']
  #allocation1 [shape = 'u32[72,128]{1,0:T(1,128)}', space=vmem, size = 0x9000, scoped, tag = 'internal scratch']
  %s0 = inlined_call_operand.vmem [shape: f32[2,768], index: 0, kind: input, shape index: {}]
  %s1 = inlined_call_operand.vmem [shape: f32[2,1], index: 1, kind: input, shape index: {}]
  %s2 = inlined_call_operand.vmem [shape: f32[768,392], index: 2, kind: input, shape index: {}]
  %s3 = inlined_call_operand.vmem [shape: f32[392,144], index: 3, kind: input, shape index: {}]
  %s4 = inlined_call_operand.vmem [shape: f32[144,32], index: 4, kind: input, shape index: {}]
  %s5 = inlined_call_operand.vmem [shape: f32[1,16], index: 5, kind: input, shape index: {}]
  %s6 = inlined_call_operand.vmem [shape: f32[32,32], index: 6, kind: input, shape index: {}]
  %s7 = inlined_call_operand.vmem [shape: f32[16,32], index: 7, kind: input, shape index: {}]
  %s8 = inlined_call_operand.vmem [shape: f32[32,32], index: 8, kind: input, shape index: {}]
  %s9 = inlined_call_operand.vmem [shape: f32[32,2], index: 9, kind: input, shape index: {}]
  %s10 = inlined_call_operand.vmem [shape: f32[8,512], index: 10, kind: input, shape index: {}]
  %s11 = inlined_call_operand.hbm [shape: f32[2,2], index: 11, kind: output, shape index: {}]
  %s12 = sld [smem:[#allocation0]]
  $region54: #{cil_forward.1} parent=0
    _
  %s14 = ssub.s32 1, %s12
  %s15 = scalar_select 0, %s14, %s12
  $region1: #{cil_forward.1} parent=0
    #allocation2 [shape = 'u8[1024]{0}', space=vmem, size = 0x400, scoped, tag = 'output window, operand 0, single buffered']
    #allocation3 [shape = 's32[1]{0}', space=sflag, size = 0x4, scoped, tag = 'scoped memory for cil_forward.1']
    %16 = vsyncpa [#allocation3], 0
    // Predicated region
    $region2: #{cil_forward.1} parent=1 // pred_check
      _
    $region3: #{cil_forward.1} parent=1 // pred_check_branch
      %18 = sbr.rel (0) target = $region5
    $region4: #{cil_forward.1} parent=1 // pred_region
      _
    $region5: #{cil_forward.1} parent=1 // pred_fallthru
      _
    // Predicated region
    $region6: #{cil_forward.1} parent=1 // pred_check
      _
    $region7: #{cil_forward.1} parent=1 // pred_check_branch
      %20 = sbr.rel (0) target = $region9
    $region8: #{cil_forward.1} parent=1 // pred_region
      _
    $region9: #{cil_forward.1} parent=1 // pred_fallthru
      _
    // Predicated region
    $region10: #{cil_forward.1} parent=1 // pred_check
      _
    $region11: #{cil_forward.1} parent=1 // pred_check_branch
      %22 = sbr.rel (0) target = $region13
    $region12: #{cil_forward.1} parent=1 // pred_region
      _
    $region13: #{cil_forward.1} parent=1 // pred_fallthru
      _
    // Predicated region
    $region14: #{cil_forward.1} parent=1 // pred_check
      _
    $region15: #{cil_forward.1} parent=1 // pred_check_branch
      %24 = sbr.rel (0) target = $region17
    $region16: #{cil_forward.1} parent=1 // pred_region
      _
    $region17: #{cil_forward.1} parent=1 // pred_fallthru
      _
    // Predicated region
    $region18: #{cil_forward.1} parent=1 // pred_check
      _
    $region19: #{cil_forward.1} parent=1 // pred_check_branch
      %26 = sbr.rel (0) target = $region21
    $region20: #{cil_forward.1} parent=1 // pred_region
      _
    $region21: #{cil_forward.1} parent=1 // pred_fallthru
      _
    // Predicated region
    $region22: #{cil_forward.1} parent=1 // pred_check
      _
    $region23: #{cil_forward.1} parent=1 // pred_check_branch
      %28 = sbr.rel (0) target = $region25
    $region24: #{cil_forward.1} parent=1 // pred_region
      _
    $region25: #{cil_forward.1} parent=1 // pred_fallthru
      _
    // Predicated region
    $region26: #{cil_forward.1} parent=1 // pred_check
      _
    $region27: #{cil_forward.1} parent=1 // pred_check_branch
      %30 = sbr.rel (0) target = $region29
    $region28: #{cil_forward.1} parent=1 // pred_region
      _
    $region29: #{cil_forward.1} parent=1 // pred_fallthru
      _
    // Predicated region
    $region30: #{cil_forward.1} parent=1 // pred_check
      _
    $region31: #{cil_forward.1} parent=1 // pred_check_branch
      %32 = sbr.rel (0) target = $region33
    $region32: #{cil_forward.1} parent=1 // pred_region
      _
    $region33: #{cil_forward.1} parent=1 // pred_fallthru
      _
    // Predicated region
    $region34: #{cil_forward.1} parent=1 // pred_check
      _
    $region35: #{cil_forward.1} parent=1 // pred_check_branch
      %34 = sbr.rel (0) target = $region37
    $region36: #{cil_forward.1} parent=1 // pred_region
      _
    $region37: #{cil_forward.1} parent=1 // pred_fallthru
      _
    // Predicated region
    $region38: #{cil_forward.1} parent=1 // pred_check
      _
    $region39: #{cil_forward.1} parent=1 // pred_check_branch
      %36 = sbr.rel (0) target = $region41
    $region40: #{cil_forward.1} parent=1 // pred_region
      _
    $region41: #{cil_forward.1} parent=1 // pred_fallthru
      _
    // Predicated region
    $region42: #{cil_forward.1} parent=1 // pred_check
      _
    $region43: #{cil_forward.1} parent=1 // pred_check_branch
      %38 = sbr.rel (0) target = $region45
    $region44: #{cil_forward.1} parent=1 // pred_region
      _
    $region45: #{cil_forward.1} parent=1 // pred_fallthru
      _
    %v39 = vld [vmem:[%s0] sm:$0xff]
    %v40 = vld [vmem:[%s0 + $0x8] sm:$0xf]
    %v41 = vld [vmem:[%s2] sm:$0xff]
    %v42 = vld [vmem:[%s2 + $0x8] sm:$0xff]
    %v43 = vld [vmem:[%s2 + $0x10] sm:$0xff]
    %v44 = vld [vmem:[%s2 + $0x18] sm:$0xff]
    %v45 = vld [vmem:[%s2 + $0x20] sm:$0xff]
    %v46 = vld [vmem:[%s2 + $0x28] sm:$0xff]
    %v47 = vld [vmem:[%s2 + $0x30] sm:$0xff]
    %v48 = vld [vmem:[%s2 + $0x38] sm:$0xff]
    %v49 = vld [vmem:[%s2 + $0x40] sm:$0xff]
    %v50 = vld [vmem:[%s2 + $0x48] sm:$0xff]
    %v51 = vld [vmem:[%s2 + $0x50] sm:$0xff]
    %v52 = vld [vmem:[%s2 + $0x58] sm:$0xff]
    %v53 = vld [vmem:[%s2 + $0x60] sm:$0xff]
    %v54 = vld [vmem:[%s2 + $0x68] sm:$0xff]
    %v55 = vld [vmem:[%s2 + $0x70] sm:$0xff]
    %v56 = vld [vmem:[%s2 + $0x78] sm:$0xff]
    %v57 = vld [vmem:[%s2 + $0x80] sm:$0xff]
    %v58 = vld [vmem:[%s2 + $0x88] sm:$0xff]
    %v59 = vld [vmem:[%s2 + $0x90] sm:$0xff]
    %v60 = vld [vmem:[%s2 + $0x98] sm:$0xff]
    %v61 = vld [vmem:[%s2 + $0xa0] sm:$0xff]
    %v62 = vld [vmem:[%s2 + $0xa8] sm:$0xff]
    %v63 = vld [vmem:[%s2 + $0xb0] sm:$0xff]
    %v64 = vld [vmem:[%s2 + $0xb8] sm:$0xff]
    %v65 = vld [vmem:[%s2 + $0xc0] sm:$0xff]
    %v66 = vld [vmem:[%s2 + $0xc8] sm:$0xff]
    %v67 = vld [vmem:[%s2 + $0xd0] sm:$0xff]
    %v68 = vld [vmem:[%s2 + $0xd8] sm:$0xff]
    %v69 = vld [vmem:[%s2 + $0xe0] sm:$0xff]
    %v70 = vld [vmem:[%s2 + $0xe8] sm:$0xff]
    %v71 = vld [vmem:[%s2 + $0xf0] sm:$0xff]
    %v72 = vld [vmem:[%s2 + $0xf8] sm:$0xff]
    %v73 = vld [vmem:[%s2 + $0x100] sm:$0xff]
    %v74 = vld [vmem:[%s2 + $0x108] sm:$0xff]
    %v75 = vld [vmem:[%s2 + $0x110] sm:$0xff]
    %v76 = vld [vmem:[%s2 + $0x118] sm:$0xff]
    %v77 = vld [vmem:[%s2 + $0x120] sm:$0xff]
    %v78 = vld [vmem:[%s2 + $0x128] sm:$0xff]
    %v79 = vld [vmem:[%s2 + $0x130] sm:$0xff]
    %v80 = vld [vmem:[%s2 + $0x138] sm:$0xff]
    %v81 = vld [vmem:[%s2 + $0x140] sm:$0xff]
    %v82 = vld [vmem:[%s2 + $0x148] sm:$0xff]
    %v83 = vld [vmem:[%s2 + $0x150] sm:$0xff]
    %v84 = vld [vmem:[%s2 + $0x158] sm:$0xff]
    %v85 = vld [vmem:[%s2 + $0x160] sm:$0xff]
    %v86 = vld [vmem:[%s2 + $0x168] sm:$0xff]
    %v87 = vld [vmem:[%s2 + $0x170] sm:$0xff]
    %v88 = vld [vmem:[%s2 + $0x178] sm:$0xff]
    %v89 = vld [vmem:[%s2 + $0x180] sm:$0xff]
    %v90 = vld [vmem:[%s2 + $0x188] sm:$0xff]
    %v91 = vld [vmem:[%s2 + $0x190] sm:$0xff]
    %v92 = vld [vmem:[%s2 + $0x198] sm:$0xff]
    %v93 = vld [vmem:[%s2 + $0x1a0] sm:$0xff]
    %v94 = vld [vmem:[%s2 + $0x1a8] sm:$0xff]
    %v95 = vld [vmem:[%s2 + $0x1b0] sm:$0xff]
    %v96 = vld [vmem:[%s2 + $0x1b8] sm:$0xff]
    %v97 = vld [vmem:[%s2 + $0x1c0] sm:$0xff]
    %v98 = vld [vmem:[%s2 + $0x1c8] sm:$0xff]
    %v99 = vld [vmem:[%s2 + $0x1d0] sm:$0xff]
    %v100 = vld [vmem:[%s2 + $0x1d8] sm:$0xff]
    %v101 = vld [vmem:[%s2 + $0x1e0] sm:$0xff]
    %v102 = vld [vmem:[%s2 + $0x1e8] sm:$0xff]
    %v103 = vld [vmem:[%s2 + $0x1f0] sm:$0xff]
    %v104 = vld [vmem:[%s2 + $0x1f8] sm:$0xff]
    %v105 = vld [vmem:[%s2 + $0x200] sm:$0xff]
    %v106 = vld [vmem:[%s2 + $0x208] sm:$0xff]
    %v107 = vld [vmem:[%s2 + $0x210] sm:$0xff]
    %v108 = vld [vmem:[%s2 + $0x218] sm:$0xff]
    %v109 = vld [vmem:[%s2 + $0x220] sm:$0xff]
    %v110 = vld [vmem:[%s2 + $0x228] sm:$0xff]
    %v111 = vld [vmem:[%s2 + $0x230] sm:$0xff]
    %v112 = vld [vmem:[%s2 + $0x238] sm:$0xff]
    %v113 = vld [vmem:[%s2 + $0x240] sm:$0xff]
    %v114 = vld [vmem:[%s2 + $0x248] sm:$0xff]
    %v115 = vld [vmem:[%s2 + $0x250] sm:$0xff]
    %v116 = vld [vmem:[%s2 + $0x258] sm:$0xff]
    %v117 = vld [vmem:[%s2 + $0x260] sm:$0xff]
    %v118 = vld [vmem:[%s2 + $0x268] sm:$0xff]
    %v119 = vld [vmem:[%s2 + $0x270] sm:$0xff]
    %v120 = vld [vmem:[%s2 + $0x278] sm:$0xff]
    %v121 = vld [vmem:[%s2 + $0x280] sm:$0xff]
    %v122 = vld [vmem:[%s2 + $0x288] sm:$0xff]
    %v123 = vld [vmem:[%s2 + $0x290] sm:$0xff]
    %v124 = vld [vmem:[%s2 + $0x298] sm:$0xff]
    %v125 = vld [vmem:[%s2 + $0x2a0] sm:$0xff]
    %v126 = vld [vmem:[%s2 + $0x2a8] sm:$0xff]
    %v127 = vld [vmem:[%s2 + $0x2b0] sm:$0xff]
    %v128 = vld [vmem:[%s2 + $0x2b8] sm:$0xff]
    %v129 = vld [vmem:[%s2 + $0x2c0] sm:$0xff]
    %v130 = vld [vmem:[%s2 + $0x2c8] sm:$0xff]
    %v131 = vld [vmem:[%s2 + $0x2d0] sm:$0xff]
    %v132 = vld [vmem:[%s2 + $0x2d8] sm:$0xff]
    %v133 = vld [vmem:[%s2 + $0x2e0] sm:$0xff]
    %v134 = vld [vmem:[%s2 + $0x2e8] sm:$0xff]
    %v135 = vld [vmem:[%s2 + $0x2f0] sm:$0xff]
    %v136 = vld [vmem:[%s2 + $0x2f8] sm:$0xff]
    %v137 = vld [vmem:[%s2 + $0x300] sm:$0xff]
    %v138 = vld [vmem:[%s2 + $0x308] sm:$0xff]
    %v139 = vld [vmem:[%s2 + $0x310] sm:$0xff]
    %v140 = vld [vmem:[%s2 + $0x318] sm:$0xff]
    %v141 = vld [vmem:[%s2 + $0x320] sm:$0xff]
    %v142 = vld [vmem:[%s2 + $0x328] sm:$0xff]
    %v143 = vld [vmem:[%s2 + $0x330] sm:$0xff]
    %v144 = vld [vmem:[%s2 + $0x338] sm:$0xff]
    %v145 = vld [vmem:[%s2 + $0x340] sm:$0xff]
    %v146 = vld [vmem:[%s2 + $0x348] sm:$0xff]
    %v147 = vld [vmem:[%s2 + $0x350] sm:$0xff]
    %v148 = vld [vmem:[%s2 + $0x358] sm:$0xff]
    %v149 = vld [vmem:[%s2 + $0x360] sm:$0xff]
    %v150 = vld [vmem:[%s2 + $0x368] sm:$0xff]
    %v151 = vld [vmem:[%s2 + $0x370] sm:$0xff]
    %v152 = vld [vmem:[%s2 + $0x378] sm:$0xff]
    %v153 = vld [vmem:[%s2 + $0x380] sm:$0xff]
    %v154 = vld [vmem:[%s2 + $0x388] sm:$0xff]
    %v155 = vld [vmem:[%s2 + $0x390] sm:$0xff]
    %v156 = vld [vmem:[%s2 + $0x398] sm:$0xff]
    %v157 = vld [vmem:[%s2 + $0x3a0] sm:$0xff]
    %v158 = vld [vmem:[%s2 + $0x3a8] sm:$0xff]
    %v159 = vld [vmem:[%s2 + $0x3b0] sm:$0xff]
    %v160 = vld [vmem:[%s2 + $0x3b8] sm:$0xff]
    %v161 = vld [vmem:[%s2 + $0x3c0] sm:$0xff]
    %v162 = vld [vmem:[%s2 + $0x3c8] sm:$0xff]
    %v163 = vld [vmem:[%s2 + $0x3d0] sm:$0xff]
    %v164 = vld [vmem:[%s2 + $0x3d8] sm:$0xff]
    %v165 = vld [vmem:[%s2 + $0x3e0] sm:$0xff]
    %v166 = vld [vmem:[%s2 + $0x3e8] sm:$0xff]
    %v167 = vld [vmem:[%s2 + $0x3f0] sm:$0xff]
    %v168 = vld [vmem:[%s2 + $0x3f8] sm:$0xff]
    %v169 = vld [vmem:[%s2 + $0x400] sm:$0xff]
    %v170 = vld [vmem:[%s2 + $0x408] sm:$0xff]
    %v171 = vld [vmem:[%s2 + $0x410] sm:$0xff]
    %v172 = vld [vmem:[%s2 + $0x418] sm:$0xff]
    %v173 = vld [vmem:[%s2 + $0x420] sm:$0xff]
    %v174 = vld [vmem:[%s2 + $0x428] sm:$0xff]
    %v175 = vld [vmem:[%s2 + $0x430] sm:$0xff]
    %v176 = vld [vmem:[%s2 + $0x438] sm:$0xff]
    %v177 = vld [vmem:[%s2 + $0x440] sm:$0xff]
    %v178 = vld [vmem:[%s2 + $0x448] sm:$0xff]
    %v179 = vld [vmem:[%s2 + $0x450] sm:$0xff]
    %v180 = vld [vmem:[%s2 + $0x458] sm:$0xff]
    %v181 = vld [vmem:[%s2 + $0x460] sm:$0xff]
    %v182 = vld [vmem:[%s2 + $0x468] sm:$0xff]
    %v183 = vld [vmem:[%s2 + $0x470] sm:$0xff]
    %v184 = vld [vmem:[%s2 + $0x478] sm:$0xff]
    %v185 = vld [vmem:[%s2 + $0x480] sm:$0xff]
    %v186 = vld [vmem:[%s2 + $0x488] sm:$0xff]
    %v187 = vld [vmem:[%s2 + $0x490] sm:$0xff]
    %v188 = vld [vmem:[%s2 + $0x498] sm:$0xff]
    %v189 = vld [vmem:[%s2 + $0x4a0] sm:$0xff]
    %v190 = vld [vmem:[%s2 + $0x4a8] sm:$0xff]
    %v191 = vld [vmem:[%s2 + $0x4b0] sm:$0xff]
    %v192 = vld [vmem:[%s2 + $0x4b8] sm:$0xff]
    %v193 = vld [vmem:[%s2 + $0x4c0] sm:$0xff]
    %v194 = vld [vmem:[%s2 + $0x4c8] sm:$0xff]
    %v195 = vld [vmem:[%s2 + $0x4d0] sm:$0xff]
    %v196 = vld [vmem:[%s2 + $0x4d8] sm:$0xff]
    %v197 = vld [vmem:[%s2 + $0x4e0] sm:$0xff]
    %v198 = vld [vmem:[%s2 + $0x4e8] sm:$0xff]
    %v199 = vld [vmem:[%s2 + $0x4f0] sm:$0xff]
    %v200 = vld [vmem:[%s2 + $0x4f8] sm:$0xff]
    %v201 = vld [vmem:[%s2 + $0x500] sm:$0xff]
    %v202 = vld [vmem:[%s2 + $0x508] sm:$0xff]
    %v203 = vld [vmem:[%s2 + $0x510] sm:$0xff]
    %v204 = vld [vmem:[%s2 + $0x518] sm:$0xff]
    %v205 = vld [vmem:[%s2 + $0x520] sm:$0xff]
    %v206 = vld [vmem:[%s2 + $0x528] sm:$0xff]
    %v207 = vld [vmem:[%s2 + $0x530] sm:$0xff]
    %v208 = vld [vmem:[%s2 + $0x538] sm:$0xff]
    %v209 = vld [vmem:[%s2 + $0x540] sm:$0xff]
    %v210 = vld [vmem:[%s2 + $0x548] sm:$0xff]
    %v211 = vld [vmem:[%s2 + $0x550] sm:$0xff]
    %v212 = vld [vmem:[%s2 + $0x558] sm:$0xff]
    %v213 = vld [vmem:[%s2 + $0x560] sm:$0xff]
    %v214 = vld [vmem:[%s2 + $0x568] sm:$0xff]
    %v215 = vld [vmem:[%s2 + $0x570] sm:$0xff]
    %v216 = vld [vmem:[%s2 + $0x578] sm:$0xff]
    %v217 = vld [vmem:[%s2 + $0x580] sm:$0xff]
    %v218 = vld [vmem:[%s2 + $0x588] sm:$0xff]
    %v219 = vld [vmem:[%s2 + $0x590] sm:$0xff]
    %v220 = vld [vmem:[%s2 + $0x598] sm:$0xff]
    %v221 = vld [vmem:[%s2 + $0x5a0] sm:$0xff]
    %v222 = vld [vmem:[%s2 + $0x5a8] sm:$0xff]
    %v223 = vld [vmem:[%s2 + $0x5b0] sm:$0xff]
    %v224 = vld [vmem:[%s2 + $0x5b8] sm:$0xff]
    %v225 = vld [vmem:[%s2 + $0x5c0] sm:$0xff]
    %v226 = vld [vmem:[%s2 + $0x5c8] sm:$0xff]
    %v227 = vld [vmem:[%s2 + $0x5d0] sm:$0xff]
    %v228 = vld [vmem:[%s2 + $0x5d8] sm:$0xff]
    %v229 = vld [vmem:[%s2 + $0x5e0] sm:$0xff]
    %v230 = vld [vmem:[%s2 + $0x5e8] sm:$0xff]
    %v231 = vld [vmem:[%s2 + $0x5f0] sm:$0xff]
    %v232 = vld [vmem:[%s2 + $0x5f8] sm:$0xff]
    %v233 = vld [vmem:[%s2 + $0x600] sm:$0xff]
    %v234 = vld [vmem:[%s2 + $0x608] sm:$0xff]
    %v235 = vld [vmem:[%s2 + $0x610] sm:$0xff]
    %v236 = vld [vmem:[%s2 + $0x618] sm:$0xff]
    %v237 = vld [vmem:[%s2 + $0x620] sm:$0xff]
    %v238 = vld [vmem:[%s2 + $0x628] sm:$0xff]
    %v239 = vld [vmem:[%s2 + $0x630] sm:$0xff]
    %v240 = vld [vmem:[%s2 + $0x638] sm:$0xff]
    %v241 = vld [vmem:[%s2 + $0x640] sm:$0xff]
    %v242 = vld [vmem:[%s2 + $0x648] sm:$0xff]
    %v243 = vld [vmem:[%s2 + $0x650] sm:$0xff]
    %v244 = vld [vmem:[%s2 + $0x658] sm:$0xff]
    %v245 = vld [vmem:[%s2 + $0x660] sm:$0xff]
    %v246 = vld [vmem:[%s2 + $0x668] sm:$0xff]
    %v247 = vld [vmem:[%s2 + $0x670] sm:$0xff]
    %v248 = vld [vmem:[%s2 + $0x678] sm:$0xff]
    %v249 = vld [vmem:[%s2 + $0x680] sm:$0xff]
    %v250 = vld [vmem:[%s2 + $0x688] sm:$0xff]
    %v251 = vld [vmem:[%s2 + $0x690] sm:$0xff]
    %v252 = vld [vmem:[%s2 + $0x698] sm:$0xff]
    %v253 = vld [vmem:[%s2 + $0x6a0] sm:$0xff]
    %v254 = vld [vmem:[%s2 + $0x6a8] sm:$0xff]
    %v255 = vld [vmem:[%s2 + $0x6b0] sm:$0xff]
    %v256 = vld [vmem:[%s2 + $0x6b8] sm:$0xff]
    %v257 = vld [vmem:[%s2 + $0x6c0] sm:$0xff]
    %v258 = vld [vmem:[%s2 + $0x6c8] sm:$0xff]
    %v259 = vld [vmem:[%s2 + $0x6d0] sm:$0xff]
    %v260 = vld [vmem:[%s2 + $0x6d8] sm:$0xff]
    %v261 = vld [vmem:[%s2 + $0x6e0] sm:$0xff]
    %v262 = vld [vmem:[%s2 + $0x6e8] sm:$0xff]
    %v263 = vld [vmem:[%s2 + $0x6f0] sm:$0xff]
    %v264 = vld [vmem:[%s2 + $0x6f8] sm:$0xff]
    %v265 = vld [vmem:[%s2 + $0x700] sm:$0xff]
    %v266 = vld [vmem:[%s2 + $0x708] sm:$0xff]
    %v267 = vld [vmem:[%s2 + $0x710] sm:$0xff]
    %v268 = vld [vmem:[%s2 + $0x718] sm:$0xff]
    %v269 = vld [vmem:[%s2 + $0x720] sm:$0xff]
    %v270 = vld [vmem:[%s2 + $0x728] sm:$0xff]
    %v271 = vld [vmem:[%s2 + $0x730] sm:$0xff]
    %v272 = vld [vmem:[%s2 + $0x738] sm:$0xff]
    %v273 = vld [vmem:[%s2 + $0x740] sm:$0xff]
    %v274 = vld [vmem:[%s2 + $0x748] sm:$0xff]
    %v275 = vld [vmem:[%s2 + $0x750] sm:$0xff]
    %v276 = vld [vmem:[%s2 + $0x758] sm:$0xff]
    %v277 = vld [vmem:[%s2 + $0x760] sm:$0xff]
    %v278 = vld [vmem:[%s2 + $0x768] sm:$0xff]
    %v279 = vld [vmem:[%s2 + $0x770] sm:$0xff]
    %v280 = vld [vmem:[%s2 + $0x778] sm:$0xff]
    %v281 = vld [vmem:[%s2 + $0x780] sm:$0xff]
    %v282 = vld [vmem:[%s2 + $0x788] sm:$0xff]
    %v283 = vld [vmem:[%s2 + $0x790] sm:$0xff]
    %v284 = vld [vmem:[%s2 + $0x798] sm:$0xff]
    %v285 = vld [vmem:[%s2 + $0x7a0] sm:$0xff]
    %v286 = vld [vmem:[%s2 + $0x7a8] sm:$0xff]
    %v287 = vld [vmem:[%s2 + $0x7b0] sm:$0xff]
    %v288 = vld [vmem:[%s2 + $0x7b8] sm:$0xff]
    %v289 = vld [vmem:[%s2 + $0x7c0] sm:$0xff]
    %v290 = vld [vmem:[%s2 + $0x7c8] sm:$0xff]
    %v291 = vld [vmem:[%s2 + $0x7d0] sm:$0xff]
    %v292 = vld [vmem:[%s2 + $0x7d8] sm:$0xff]
    %v293 = vld [vmem:[%s2 + $0x7e0] sm:$0xff]
    %v294 = vld [vmem:[%s2 + $0x7e8] sm:$0xff]
    %v295 = vld [vmem:[%s2 + $0x7f0] sm:$0xff]
    %v296 = vld [vmem:[%s2 + $0x7f8] sm:$0xff]
    %v297 = vld [vmem:[%s2 + $0x800] sm:$0xff]
    %v298 = vld [vmem:[%s2 + $0x808] sm:$0xff]
    %v299 = vld [vmem:[%s2 + $0x810] sm:$0xff]
    %v300 = vld [vmem:[%s2 + $0x818] sm:$0xff]
    %v301 = vld [vmem:[%s2 + $0x820] sm:$0xff]
    %v302 = vld [vmem:[%s2 + $0x828] sm:$0xff]
    %v303 = vld [vmem:[%s2 + $0x830] sm:$0xff]
    %v304 = vld [vmem:[%s2 + $0x838] sm:$0xff]
    %v305 = vld [vmem:[%s2 + $0x840] sm:$0xff]
    %v306 = vld [vmem:[%s2 + $0x848] sm:$0xff]
    %v307 = vld [vmem:[%s2 + $0x850] sm:$0xff]
    %v308 = vld [vmem:[%s2 + $0x858] sm:$0xff]
    %v309 = vld [vmem:[%s2 + $0x860] sm:$0xff]
    %v310 = vld [vmem:[%s2 + $0x868] sm:$0xff]
    %v311 = vld [vmem:[%s2 + $0x870] sm:$0xff]
    %v312 = vld [vmem:[%s2 + $0x878] sm:$0xff]
    %v313 = vld [vmem:[%s2 + $0x880] sm:$0xff]
    %v314 = vld [vmem:[%s2 + $0x888] sm:$0xff]
    %v315 = vld [vmem:[%s2 + $0x890] sm:$0xff]
    %v316 = vld [vmem:[%s2 + $0x898] sm:$0xff]
    %v317 = vld [vmem:[%s2 + $0x8a0] sm:$0xff]
    %v318 = vld [vmem:[%s2 + $0x8a8] sm:$0xff]
    %v319 = vld [vmem:[%s2 + $0x8b0] sm:$0xff]
    %v320 = vld [vmem:[%s2 + $0x8b8] sm:$0xff]
    %v321 = vld [vmem:[%s2 + $0x8c0] sm:$0xff]
    %v322 = vld [vmem:[%s2 + $0x8c8] sm:$0xff]
    %v323 = vld [vmem:[%s2 + $0x8d0] sm:$0xff]
    %v324 = vld [vmem:[%s2 + $0x8d8] sm:$0xff]
    %v325 = vld [vmem:[%s2 + $0x8e0] sm:$0xff]
    %v326 = vld [vmem:[%s2 + $0x8e8] sm:$0xff]
    %v327 = vld [vmem:[%s2 + $0x8f0] sm:$0xff]
    %v328 = vld [vmem:[%s2 + $0x8f8] sm:$0xff]
    %v329 = vld [vmem:[%s2 + $0x900] sm:$0xff]
    %v330 = vld [vmem:[%s2 + $0x908] sm:$0xff]
    %v331 = vld [vmem:[%s2 + $0x910] sm:$0xff]
    %v332 = vld [vmem:[%s2 + $0x918] sm:$0xff]
    %v333 = vld [vmem:[%s2 + $0x920] sm:$0xff]
    %v334 = vld [vmem:[%s2 + $0x928] sm:$0xff]
    %v335 = vld [vmem:[%s2 + $0x930] sm:$0xff]
    %v336 = vld [vmem:[%s2 + $0x938] sm:$0xff]
    %v337 = vld [vmem:[%s2 + $0x940] sm:$0xff]
    %v338 = vld [vmem:[%s2 + $0x948] sm:$0xff]
    %v339 = vld [vmem:[%s2 + $0x950] sm:$0xff]
    %v340 = vld [vmem:[%s2 + $0x958] sm:$0xff]
    %v341 = vld [vmem:[%s2 + $0x960] sm:$0xff]
    %v342 = vld [vmem:[%s2 + $0x968] sm:$0xff]
    %v343 = vld [vmem:[%s2 + $0x970] sm:$0xff]
    %v344 = vld [vmem:[%s2 + $0x978] sm:$0xff]
    %v345 = vld [vmem:[%s2 + $0x980] sm:$0xff]
    %v346 = vld [vmem:[%s2 + $0x988] sm:$0xff]
    %v347 = vld [vmem:[%s2 + $0x990] sm:$0xff]
    %v348 = vld [vmem:[%s2 + $0x998] sm:$0xff]
    %v349 = vld [vmem:[%s2 + $0x9a0] sm:$0xff]
    %v350 = vld [vmem:[%s2 + $0x9a8] sm:$0xff]
    %v351 = vld [vmem:[%s2 + $0x9b0] sm:$0xff]
    %v352 = vld [vmem:[%s2 + $0x9b8] sm:$0xff]
    %v353 = vld [vmem:[%s2 + $0x9c0] sm:$0xff]
    %v354 = vld [vmem:[%s2 + $0x9c8] sm:$0xff]
    %v355 = vld [vmem:[%s2 + $0x9d0] sm:$0xff]
    %v356 = vld [vmem:[%s2 + $0x9d8] sm:$0xff]
    %v357 = vld [vmem:[%s2 + $0x9e0] sm:$0xff]
    %v358 = vld [vmem:[%s2 + $0x9e8] sm:$0xff]
    %v359 = vld [vmem:[%s2 + $0x9f0] sm:$0xff]
    %v360 = vld [vmem:[%s2 + $0x9f8] sm:$0xff]
    %v361 = vld [vmem:[%s2 + $0xa00] sm:$0xff]
    %v362 = vld [vmem:[%s2 + $0xa08] sm:$0xff]
    %v363 = vld [vmem:[%s2 + $0xa10] sm:$0xff]
    %v364 = vld [vmem:[%s2 + $0xa18] sm:$0xff]
    %v365 = vld [vmem:[%s2 + $0xa20] sm:$0xff]
    %v366 = vld [vmem:[%s2 + $0xa28] sm:$0xff]
    %v367 = vld [vmem:[%s2 + $0xa30] sm:$0xff]
    %v368 = vld [vmem:[%s2 + $0xa38] sm:$0xff]
    %v369 = vld [vmem:[%s2 + $0xa40] sm:$0xff]
    %v370 = vld [vmem:[%s2 + $0xa48] sm:$0xff]
    %v371 = vld [vmem:[%s2 + $0xa50] sm:$0xff]
    %v372 = vld [vmem:[%s2 + $0xa58] sm:$0xff]
    %v373 = vld [vmem:[%s2 + $0xa60] sm:$0xff]
    %v374 = vld [vmem:[%s2 + $0xa68] sm:$0xff]
    %v375 = vld [vmem:[%s2 + $0xa70] sm:$0xff]
    %v376 = vld [vmem:[%s2 + $0xa78] sm:$0xff]
    %v377 = vld [vmem:[%s2 + $0xa80] sm:$0xff]
    %v378 = vld [vmem:[%s2 + $0xa88] sm:$0xff]
    %v379 = vld [vmem:[%s2 + $0xa90] sm:$0xff]
    %v380 = vld [vmem:[%s2 + $0xa98] sm:$0xff]
    %v381 = vld [vmem:[%s2 + $0xaa0] sm:$0xff]
    %v382 = vld [vmem:[%s2 + $0xaa8] sm:$0xff]
    %v383 = vld [vmem:[%s2 + $0xab0] sm:$0xff]
    %v384 = vld [vmem:[%s2 + $0xab8] sm:$0xff]
    %v385 = vld [vmem:[%s2 + $0xac0] sm:$0xff]
    %v386 = vld [vmem:[%s2 + $0xac8] sm:$0xff]
    %v387 = vld [vmem:[%s2 + $0xad0] sm:$0xff]
    %v388 = vld [vmem:[%s2 + $0xad8] sm:$0xff]
    %v389 = vld [vmem:[%s2 + $0xae0] sm:$0xff]
    %v390 = vld [vmem:[%s2 + $0xae8] sm:$0xff]
    %v391 = vld [vmem:[%s2 + $0xaf0] sm:$0xff]
    %v392 = vld [vmem:[%s2 + $0xaf8] sm:$0xff]
    %v393 = vld [vmem:[%s2 + $0xb00] sm:$0xff]
    %v394 = vld [vmem:[%s2 + $0xb08] sm:$0xff]
    %v395 = vld [vmem:[%s2 + $0xb10] sm:$0xff]
    %v396 = vld [vmem:[%s2 + $0xb18] sm:$0xff]
    %v397 = vld [vmem:[%s2 + $0xb20] sm:$0xff]
    %v398 = vld [vmem:[%s2 + $0xb28] sm:$0xff]
    %v399 = vld [vmem:[%s2 + $0xb30] sm:$0xff]
    %v400 = vld [vmem:[%s2 + $0xb38] sm:$0xff]
    %v401 = vld [vmem:[%s2 + $0xb40] sm:$0xff]
    %v402 = vld [vmem:[%s2 + $0xb48] sm:$0xff]
    %v403 = vld [vmem:[%s2 + $0xb50] sm:$0xff]
    %v404 = vld [vmem:[%s2 + $0xb58] sm:$0xff]
    %v405 = vld [vmem:[%s2 + $0xb60] sm:$0xff]
    %v406 = vld [vmem:[%s2 + $0xb68] sm:$0xff]
    %v407 = vld [vmem:[%s2 + $0xb70] sm:$0xff]
    %v408 = vld [vmem:[%s2 + $0xb78] sm:$0xff]
    %v409 = vld [vmem:[%s2 + $0xb80] sm:$0xff]
    %v410 = vld [vmem:[%s2 + $0xb88] sm:$0xff]
    %v411 = vld [vmem:[%s2 + $0xb90] sm:$0xff]
    %v412 = vld [vmem:[%s2 + $0xb98] sm:$0xff]
    %v413 = vld [vmem:[%s2 + $0xba0] sm:$0xff]
    %v414 = vld [vmem:[%s2 + $0xba8] sm:$0xff]
    %v415 = vld [vmem:[%s2 + $0xbb0] sm:$0xff]
    %v416 = vld [vmem:[%s2 + $0xbb8] sm:$0xff]
    %v417 = vld [vmem:[%s2 + $0xbc0] sm:$0xff]
    %v418 = vld [vmem:[%s2 + $0xbc8] sm:$0xff]
    %v419 = vld [vmem:[%s2 + $0xbd0] sm:$0xff]
    %v420 = vld [vmem:[%s2 + $0xbd8] sm:$0xff]
    %v421 = vld [vmem:[%s2 + $0xbe0] sm:$0xff]
    %v422 = vld [vmem:[%s2 + $0xbe8] sm:$0xff]
    %v423 = vld [vmem:[%s2 + $0xbf0] sm:$0xff]
    %v424 = vld [vmem:[%s2 + $0xbf8] sm:$0xff]
    %v425 = vld [vmem:[%s10] ss:$8 sm:$0xf]
    %v427 = vperm.slane %v425, 0
    %v428 = vperm.slane %v425, 1
    %v429 = vperm.slane %v425, 2
    %v430 = vperm.slane %v425, 3
    %437 = vst [vmem:[#allocation1] ss:$4 sm:$0xff] %v39
    %s438 = scalar_lea.vmem [#allocation1], 32
    %439 = vst [vmem:[%s438] ss:$4 sm:$0xff] %v40
    %v440 = vld.sshfl [vmem:[#allocation1] sm:$0xff pattern:$0x73625140]
    %v441 = vld.sshfl [vmem:[#allocation1 + $0x8] sm:$0xff pattern:$0x73625140]
    %v442 = vld.sshfl [vmem:[#allocation1 + $0x10] sm:$0xff pattern:$0x73625140]
    %v443 = vld.sshfl [vmem:[#allocation1 + $0x18] sm:$0xff pattern:$0x73625140]
    %v444 = vld.sshfl [vmem:[#allocation1 + $0x20] sm:$0xff pattern:$0x73625140]
    %v445 = vld.sshfl [vmem:[#allocation1 + $0x28] sm:$0xff pattern:$0x73625140]
    %452 = vmatpush.msra.mxu0 %v101
    %453 = vmatpush.msra.mxu0 %v97
    %454 = vmatpush.msra.mxu0 %v93
    %455 = vmatpush.msra.mxu0 %v89
    %456 = vmatpush.msra.mxu0 %v85
    %457 = vmatpush.msra.mxu0 %v81
    %458 = vmatpush.msra.mxu0 %v77
    %459 = vmatpush.msra.mxu0 %v73
    %460 = vmatpush.msra.mxu0 %v69
    %461 = vmatpush.msra.mxu0 %v65
    %462 = vmatpush.msra.mxu0 %v61
    %463 = vmatpush.msra.mxu0 %v57
    %464 = vmatpush.msra.mxu0 %v53
    %465 = vmatpush.msra.mxu0 %v49
    %466 = vmatpush.msra.mxu0 %v45
    %467 = vmatpush.msra.mxu0 %v41
    %468 = vmatmul.f32.gmra.mxu0 %v440
    %v469 = vpop.f32.mrf.mxu0
    %v470 = vadd.f32 %v427, %v469
    %471 = vdwg.mxu0
    %472 = vmatpush.msra.mxu0 %v165
    %473 = vmatpush.msra.mxu0 %v161
    %474 = vmatpush.msra.mxu0 %v157
    %475 = vmatpush.msra.mxu0 %v153
    %476 = vmatpush.msra.mxu0 %v149
    %477 = vmatpush.msra.mxu0 %v145
    %478 = vmatpush.msra.mxu0 %v141
    %479 = vmatpush.msra.mxu0 %v137
    %480 = vmatpush.msra.mxu0 %v133
    %481 = vmatpush.msra.mxu0 %v129
    %482 = vmatpush.msra.mxu0 %v125
    %483 = vmatpush.msra.mxu0 %v121
    %484 = vmatpush.msra.mxu0 %v117
    %485 = vmatpush.msra.mxu0 %v113
    %486 = vmatpush.msra.mxu0 %v109
    %487 = vmatpush.msra.mxu0 %v105
    %488 = vmatmul.f32.gmra.mxu0 %v441
    %v489 = vpop.f32.mrf.mxu0
    %v490 = vadd.f32 %v470, %v489
    %491 = vdwg.mxu0
    %492 = vmatpush.msra.mxu0 %v229
    %493 = vmatpush.msra.mxu0 %v225
    %494 = vmatpush.msra.mxu0 %v221
    %495 = vmatpush.msra.mxu0 %v217
    %496 = vmatpush.msra.mxu0 %v213
    %497 = vmatpush.msra.mxu0 %v209
    %498 = vmatpush.msra.mxu0 %v205
    %499 = vmatpush.msra.mxu0 %v201
    %500 = vmatpush.msra.mxu0 %v197
    %501 = vmatpush.msra.mxu0 %v193
    %502 = vmatpush.msra.mxu0 %v189
    %503 = vmatpush.msra.mxu0 %v185
    %504 = vmatpush.msra.mxu0 %v181
    %505 = vmatpush.msra.mxu0 %v177
    %506 = vmatpush.msra.mxu0 %v173
    %507 = vmatpush.msra.mxu0 %v169
    %508 = vmatmul.f32.gmra.mxu0 %v442
    %v509 = vpop.f32.mrf.mxu0
    %v510 = vadd.f32 %v490, %v509
    %511 = vdwg.mxu0
    %512 = vmatpush.msra.mxu0 %v293
    %513 = vmatpush.msra.mxu0 %v289
    %514 = vmatpush.msra.mxu0 %v285
    %515 = vmatpush.msra.mxu0 %v281
    %516 = vmatpush.msra.mxu0 %v277
    %517 = vmatpush.msra.mxu0 %v273
    %518 = vmatpush.msra.mxu0 %v269
    %519 = vmatpush.msra.mxu0 %v265
    %520 = vmatpush.msra.mxu0 %v261
    %521 = vmatpush.msra.mxu0 %v257
    %522 = vmatpush.msra.mxu0 %v253
    %523 = vmatpush.msra.mxu0 %v249
    %524 = vmatpush.msra.mxu0 %v245
    %525 = vmatpush.msra.mxu0 %v241
    %526 = vmatpush.msra.mxu0 %v237
    %527 = vmatpush.msra.mxu0 %v233
    %528 = vmatmul.f32.gmra.mxu0 %v443
    %v529 = vpop.f32.mrf.mxu0
    %v530 = vadd.f32 %v510, %v529
    %531 = vdwg.mxu0
    %532 = vmatpush.msra.mxu0 %v357
    %533 = vmatpush.msra.mxu0 %v353
    %534 = vmatpush.msra.mxu0 %v349
    %535 = vmatpush.msra.mxu0 %v345
    %536 = vmatpush.msra.mxu0 %v341
    %537 = vmatpush.msra.mxu0 %v337
    %538 = vmatpush.msra.mxu0 %v333
    %539 = vmatpush.msra.mxu0 %v329
    %540 = vmatpush.msra.mxu0 %v325
    %541 = vmatpush.msra.mxu0 %v321
    %542 = vmatpush.msra.mxu0 %v317
    %543 = vmatpush.msra.mxu0 %v313
    %544 = vmatpush.msra.mxu0 %v309
    %545 = vmatpush.msra.mxu0 %v305
    %546 = vmatpush.msra.mxu0 %v301
    %547 = vmatpush.msra.mxu0 %v297
    %548 = vmatmul.f32.gmra.mxu0 %v444
    %v549 = vpop.f32.mrf.mxu0
    %v550 = vadd.f32 %v530, %v549
    %551 = vdwg.mxu0
    %552 = vmatpush.msra.mxu0 %v421
    %553 = vmatpush.msra.mxu0 %v417
    %554 = vmatpush.msra.mxu0 %v413
    %555 = vmatpush.msra.mxu0 %v409
    %556 = vmatpush.msra.mxu0 %v405
    %557 = vmatpush.msra.mxu0 %v401
    %558 = vmatpush.msra.mxu0 %v397
    %559 = vmatpush.msra.mxu0 %v393
    %560 = vmatpush.msra.mxu0 %v389
    %561 = vmatpush.msra.mxu0 %v385
    %562 = vmatpush.msra.mxu0 %v381
    %563 = vmatpush.msra.mxu0 %v377
    %564 = vmatpush.msra.mxu0 %v373
    %565 = vmatpush.msra.mxu0 %v369
    %566 = vmatpush.msra.mxu0 %v365
    %567 = vmatpush.msra.mxu0 %v361
    %568 = vmatmul.f32.gmra.mxu0 %v445
    %v569 = vpop.f32.mrf.mxu0
    %v570 = vadd.f32 %v550, %v569
    %571 = vdwg.mxu0
    %572 = vmatpush.msra.mxu0 %v102
    %573 = vmatpush.msra.mxu0 %v98
    %574 = vmatpush.msra.mxu0 %v94
    %575 = vmatpush.msra.mxu0 %v90
    %576 = vmatpush.msra.mxu0 %v86
    %577 = vmatpush.msra.mxu0 %v82
    %578 = vmatpush.msra.mxu0 %v78
    %579 = vmatpush.msra.mxu0 %v74
    %580 = vmatpush.msra.mxu0 %v70
    %581 = vmatpush.msra.mxu0 %v66
    %582 = vmatpush.msra.mxu0 %v62
    %583 = vmatpush.msra.mxu0 %v58
    %584 = vmatpush.msra.mxu0 %v54
    %585 = vmatpush.msra.mxu0 %v50
    %586 = vmatpush.msra.mxu0 %v46
    %587 = vmatpush.msra.mxu0 %v42
    %588 = vmatmul.f32.gmra.mxu0 %v440
    %v589 = vpop.f32.mrf.mxu0
    %v590 = vadd.f32 %v428, %v589
    %591 = vdwg.mxu0
    %592 = vmatpush.msra.mxu0 %v166
    %593 = vmatpush.msra.mxu0 %v162
    %594 = vmatpush.msra.mxu0 %v158
    %595 = vmatpush.msra.mxu0 %v154
    %596 = vmatpush.msra.mxu0 %v150
    %597 = vmatpush.msra.mxu0 %v146
    %598 = vmatpush.msra.mxu0 %v142
    %599 = vmatpush.msra.mxu0 %v138
    %600 = vmatpush.msra.mxu0 %v134
    %601 = vmatpush.msra.mxu0 %v130
    %602 = vmatpush.msra.mxu0 %v126
    %603 = vmatpush.msra.mxu0 %v122
    %604 = vmatpush.msra.mxu0 %v118
    %605 = vmatpush.msra.mxu0 %v114
    %606 = vmatpush.msra.mxu0 %v110
    %607 = vmatpush.msra.mxu0 %v106
    %608 = vmatmul.f32.gmra.mxu0 %v441
    %v609 = vpop.f32.mrf.mxu0
    %v610 = vadd.f32 %v590, %v609
    %611 = vdwg.mxu0
    %612 = vmatpush.msra.mxu0 %v230
    %613 = vmatpush.msra.mxu0 %v226
    %614 = vmatpush.msra.mxu0 %v222
    %615 = vmatpush.msra.mxu0 %v218
    %616 = vmatpush.msra.mxu0 %v214
    %617 = vmatpush.msra.mxu0 %v210
    %618 = vmatpush.msra.mxu0 %v206
    %619 = vmatpush.msra.mxu0 %v202
    %620 = vmatpush.msra.mxu0 %v198
    %621 = vmatpush.msra.mxu0 %v194
    %622 = vmatpush.msra.mxu0 %v190
    %623 = vmatpush.msra.mxu0 %v186
    %624 = vmatpush.msra.mxu0 %v182
    %625 = vmatpush.msra.mxu0 %v178
    %626 = vmatpush.msra.mxu0 %v174
    %627 = vmatpush.msra.mxu0 %v170
    %628 = vmatmul.f32.gmra.mxu0 %v442
    %v629 = vpop.f32.mrf.mxu0
    %v630 = vadd.f32 %v610, %v629
    %631 = vdwg.mxu0
    %632 = vmatpush.msra.mxu0 %v294
    %633 = vmatpush.msra.mxu0 %v290
    %634 = vmatpush.msra.mxu0 %v286
    %635 = vmatpush.msra.mxu0 %v282
    %636 = vmatpush.msra.mxu0 %v278
    %637 = vmatpush.msra.mxu0 %v274
    %638 = vmatpush.msra.mxu0 %v270
    %639 = vmatpush.msra.mxu0 %v266
    %640 = vmatpush.msra.mxu0 %v262
    %641 = vmatpush.msra.mxu0 %v258
    %642 = vmatpush.msra.mxu0 %v254
    %643 = vmatpush.msra.mxu0 %v250
    %644 = vmatpush.msra.mxu0 %v246
    %645 = vmatpush.msra.mxu0 %v242
    %646 = vmatpush.msra.mxu0 %v238
    %647 = vmatpush.msra.mxu0 %v234
    %648 = vmatmul.f32.gmra.mxu0 %v443
    %v649 = vpop.f32.mrf.mxu0
    %v650 = vadd.f32 %v630, %v649
    %651 = vdwg.mxu0
    %652 = vmatpush.msra.mxu0 %v358
    %653 = vmatpush.msra.mxu0 %v354
    %654 = vmatpush.msra.mxu0 %v350
    %655 = vmatpush.msra.mxu0 %v346
    %656 = vmatpush.msra.mxu0 %v342
    %657 = vmatpush.msra.mxu0 %v338
    %658 = vmatpush.msra.mxu0 %v334
    %659 = vmatpush.msra.mxu0 %v330
    %660 = vmatpush.msra.mxu0 %v326
    %661 = vmatpush.msra.mxu0 %v322
    %662 = vmatpush.msra.mxu0 %v318
    %663 = vmatpush.msra.mxu0 %v314
    %664 = vmatpush.msra.mxu0 %v310
    %665 = vmatpush.msra.mxu0 %v306
    %666 = vmatpush.msra.mxu0 %v302
    %667 = vmatpush.msra.mxu0 %v298
    %668 = vmatmul.f32.gmra.mxu0 %v444
    %v669 = vpop.f32.mrf.mxu0
    %v670 = vadd.f32 %v650, %v669
    %671 = vdwg.mxu0
    %672 = vmatpush.msra.mxu0 %v422
    %673 = vmatpush.msra.mxu0 %v418
    %674 = vmatpush.msra.mxu0 %v414
    %675 = vmatpush.msra.mxu0 %v410
    %676 = vmatpush.msra.mxu0 %v406
    %677 = vmatpush.msra.mxu0 %v402
    %678 = vmatpush.msra.mxu0 %v398
    %679 = vmatpush.msra.mxu0 %v394
    %680 = vmatpush.msra.mxu0 %v390
    %681 = vmatpush.msra.mxu0 %v386
    %682 = vmatpush.msra.mxu0 %v382
    %683 = vmatpush.msra.mxu0 %v378
    %684 = vmatpush.msra.mxu0 %v374
    %685 = vmatpush.msra.mxu0 %v370
    %686 = vmatpush.msra.mxu0 %v366
    %687 = vmatpush.msra.mxu0 %v362
    %688 = vmatmul.f32.gmra.mxu0 %v445
    %v689 = vpop.f32.mrf.mxu0
    %v690 = vadd.f32 %v670, %v689
    %691 = vdwg.mxu0
    %692 = vmatpush.msra.mxu0 %v103
    %693 = vmatpush.msra.mxu0 %v99
    %694 = vmatpush.msra.mxu0 %v95
    %695 = vmatpush.msra.mxu0 %v91
    %696 = vmatpush.msra.mxu0 %v87
    %697 = vmatpush.msra.mxu0 %v83
    %698 = vmatpush.msra.mxu0 %v79
    %699 = vmatpush.msra.mxu0 %v75
    %700 = vmatpush.msra.mxu0 %v71
    %701 = vmatpush.msra.mxu0 %v67
    %702 = vmatpush.msra.mxu0 %v63
    %703 = vmatpush.msra.mxu0 %v59
    %704 = vmatpush.msra.mxu0 %v55
    %705 = vmatpush.msra.mxu0 %v51
    %706 = vmatpush.msra.mxu0 %v47
    %707 = vmatpush.msra.mxu0 %v43
    %708 = vmatmul.f32.gmra.mxu0 %v440
    %v709 = vpop.f32.mrf.mxu0
    %v710 = vadd.f32 %v429, %v709
    %711 = vdwg.mxu0
    %712 = vmatpush.msra.mxu0 %v167
    %713 = vmatpush.msra.mxu0 %v163
    %714 = vmatpush.msra.mxu0 %v159
    %715 = vmatpush.msra.mxu0 %v155
    %716 = vmatpush.msra.mxu0 %v151
    %717 = vmatpush.msra.mxu0 %v147
    %718 = vmatpush.msra.mxu0 %v143
    %719 = vmatpush.msra.mxu0 %v139
    %720 = vmatpush.msra.mxu0 %v135
    %721 = vmatpush.msra.mxu0 %v131
    %722 = vmatpush.msra.mxu0 %v127
    %723 = vmatpush.msra.mxu0 %v123
    %724 = vmatpush.msra.mxu0 %v119
    %725 = vmatpush.msra.mxu0 %v115
    %726 = vmatpush.msra.mxu0 %v111
    %727 = vmatpush.msra.mxu0 %v107
    %728 = vmatmul.f32.gmra.mxu0 %v441
    %v729 = vpop.f32.mrf.mxu0
    %v730 = vadd.f32 %v710, %v729
    %731 = vdwg.mxu0
    %732 = vmatpush.msra.mxu0 %v231
    %733 = vmatpush.msra.mxu0 %v227
    %734 = vmatpush.msra.mxu0 %v223
    %735 = vmatpush.msra.mxu0 %v219
    %736 = vmatpush.msra.mxu0 %v215
    %737 = vmatpush.msra.mxu0 %v211
    %738 = vmatpush.msra.mxu0 %v207
    %739 = vmatpush.msra.mxu0 %v203
    %740 = vmatpush.msra.mxu0 %v199
    %741 = vmatpush.msra.mxu0 %v195
    %742 = vmatpush.msra.mxu0 %v191
    %743 = vmatpush.msra.mxu0 %v187
    %744 = vmatpush.msra.mxu0 %v183
    %745 = vmatpush.msra.mxu0 %v179
    %746 = vmatpush.msra.mxu0 %v175
    %747 = vmatpush.msra.mxu0 %v171
    %748 = vmatmul.f32.gmra.mxu0 %v442
    %v749 = vpop.f32.mrf.mxu0
    %v750 = vadd.f32 %v730, %v749
    %751 = vdwg.mxu0
    %752 = vmatpush.msra.mxu0 %v295
    %753 = vmatpush.msra.mxu0 %v291
    %754 = vmatpush.msra.mxu0 %v287
    %755 = vmatpush.msra.mxu0 %v283
    %756 = vmatpush.msra.mxu0 %v279
    %757 = vmatpush.msra.mxu0 %v275
    %758 = vmatpush.msra.mxu0 %v271
    %759 = vmatpush.msra.mxu0 %v267
    %760 = vmatpush.msra.mxu0 %v263
    %761 = vmatpush.msra.mxu0 %v259
    %762 = vmatpush.msra.mxu0 %v255
    %763 = vmatpush.msra.mxu0 %v251
    %764 = vmatpush.msra.mxu0 %v247
    %765 = vmatpush.msra.mxu0 %v243
    %766 = vmatpush.msra.mxu0 %v239
    %767 = vmatpush.msra.mxu0 %v235
    %768 = vmatmul.f32.gmra.mxu0 %v443
    %v769 = vpop.f32.mrf.mxu0
    %v770 = vadd.f32 %v750, %v769
    %771 = vdwg.mxu0
    %772 = vmatpush.msra.mxu0 %v359
    %773 = vmatpush.msra.mxu0 %v355
    %774 = vmatpush.msra.mxu0 %v351
    %775 = vmatpush.msra.mxu0 %v347
    %776 = vmatpush.msra.mxu0 %v343
    %777 = vmatpush.msra.mxu0 %v339
    %778 = vmatpush.msra.mxu0 %v335
    %779 = vmatpush.msra.mxu0 %v331
    %780 = vmatpush.msra.mxu0 %v327
    %781 = vmatpush.msra.mxu0 %v323
    %782 = vmatpush.msra.mxu0 %v319
    %783 = vmatpush.msra.mxu0 %v315
    %784 = vmatpush.msra.mxu0 %v311
    %785 = vmatpush.msra.mxu0 %v307
    %786 = vmatpush.msra.mxu0 %v303
    %787 = vmatpush.msra.mxu0 %v299
    %788 = vmatmul.f32.gmra.mxu0 %v444
    %v789 = vpop.f32.mrf.mxu0
    %v790 = vadd.f32 %v770, %v789
    %791 = vdwg.mxu0
    %792 = vmatpush.msra.mxu0 %v423
    %793 = vmatpush.msra.mxu0 %v419
    %794 = vmatpush.msra.mxu0 %v415
    %795 = vmatpush.msra.mxu0 %v411
    %796 = vmatpush.msra.mxu0 %v407
    %797 = vmatpush.msra.mxu0 %v403
    %798 = vmatpush.msra.mxu0 %v399
    %799 = vmatpush.msra.mxu0 %v395
    %800 = vmatpush.msra.mxu0 %v391
    %801 = vmatpush.msra.mxu0 %v387
    %802 = vmatpush.msra.mxu0 %v383
    %803 = vmatpush.msra.mxu0 %v379
    %804 = vmatpush.msra.mxu0 %v375
    %805 = vmatpush.msra.mxu0 %v371
    %806 = vmatpush.msra.mxu0 %v367
    %807 = vmatpush.msra.mxu0 %v363
    %808 = vmatmul.f32.gmra.mxu0 %v445
    %v809 = vpop.f32.mrf.mxu0
    %v810 = vadd.f32 %v790, %v809
    %811 = vdwg.mxu0
    %812 = vmatpush.msra.mxu0 %v104
    %813 = vmatpush.msra.mxu0 %v100
    %814 = vmatpush.msra.mxu0 %v96
    %815 = vmatpush.msra.mxu0 %v92
    %816 = vmatpush.msra.mxu0 %v88
    %817 = vmatpush.msra.mxu0 %v84
    %818 = vmatpush.msra.mxu0 %v80
    %819 = vmatpush.msra.mxu0 %v76
    %820 = vmatpush.msra.mxu0 %v72
    %821 = vmatpush.msra.mxu0 %v68
    %822 = vmatpush.msra.mxu0 %v64
    %823 = vmatpush.msra.mxu0 %v60
    %824 = vmatpush.msra.mxu0 %v56
    %825 = vmatpush.msra.mxu0 %v52
    %826 = vmatpush.msra.mxu0 %v48
    %827 = vmatpush.msra.mxu0 %v44
    %828 = vmatmul.f32.gmra.mxu0 %v440
    %v829 = vpop.f32.mrf.mxu0
    %v830 = vadd.f32 %v430, %v829
    %831 = vdwg.mxu0
    %832 = vmatpush.msra.mxu0 %v168
    %833 = vmatpush.msra.mxu0 %v164
    %834 = vmatpush.msra.mxu0 %v160
    %835 = vmatpush.msra.mxu0 %v156
    %836 = vmatpush.msra.mxu0 %v152
    %837 = vmatpush.msra.mxu0 %v148
    %838 = vmatpush.msra.mxu0 %v144
    %839 = vmatpush.msra.mxu0 %v140
    %840 = vmatpush.msra.mxu0 %v136
    %841 = vmatpush.msra.mxu0 %v132
    %842 = vmatpush.msra.mxu0 %v128
    %843 = vmatpush.msra.mxu0 %v124
    %844 = vmatpush.msra.mxu0 %v120
    %845 = vmatpush.msra.mxu0 %v116
    %846 = vmatpush.msra.mxu0 %v112
    %847 = vmatpush.msra.mxu0 %v108
    %848 = vmatmul.f32.gmra.mxu0 %v441
    %v849 = vpop.f32.mrf.mxu0
    %v850 = vadd.f32 %v830, %v849
    %851 = vdwg.mxu0
    %852 = vmatpush.msra.mxu0 %v232
    %853 = vmatpush.msra.mxu0 %v228
    %854 = vmatpush.msra.mxu0 %v224
    %855 = vmatpush.msra.mxu0 %v220
    %856 = vmatpush.msra.mxu0 %v216
    %857 = vmatpush.msra.mxu0 %v212
    %858 = vmatpush.msra.mxu0 %v208
    %859 = vmatpush.msra.mxu0 %v204
    %860 = vmatpush.msra.mxu0 %v200
    %861 = vmatpush.msra.mxu0 %v196
    %862 = vmatpush.msra.mxu0 %v192
    %863 = vmatpush.msra.mxu0 %v188
    %864 = vmatpush.msra.mxu0 %v184
    %865 = vmatpush.msra.mxu0 %v180
    %866 = vmatpush.msra.mxu0 %v176
    %867 = vmatpush.msra.mxu0 %v172
    %868 = vmatmul.f32.gmra.mxu0 %v442
    %v869 = vpop.f32.mrf.mxu0
    %v870 = vadd.f32 %v850, %v869
    %871 = vdwg.mxu0
    %872 = vmatpush.msra.mxu0 %v296
    %873 = vmatpush.msra.mxu0 %v292
    %874 = vmatpush.msra.mxu0 %v288
    %875 = vmatpush.msra.mxu0 %v284
    %876 = vmatpush.msra.mxu0 %v280
    %877 = vmatpush.msra.mxu0 %v276
    %878 = vmatpush.msra.mxu0 %v272
    %879 = vmatpush.msra.mxu0 %v268
    %880 = vmatpush.msra.mxu0 %v264
    %881 = vmatpush.msra.mxu0 %v260
    %882 = vmatpush.msra.mxu0 %v256
    %883 = vmatpush.msra.mxu0 %v252
    %884 = vmatpush.msra.mxu0 %v248
    %885 = vmatpush.msra.mxu0 %v244
    %886 = vmatpush.msra.mxu0 %v240
    %887 = vmatpush.msra.mxu0 %v236
    %888 = vmatmul.f32.gmra.mxu0 %v443
    %v889 = vpop.f32.mrf.mxu0
    %v890 = vadd.f32 %v870, %v889
    %891 = vdwg.mxu0
    %892 = vmatpush.msra.mxu0 %v360
    %893 = vmatpush.msra.mxu0 %v356
    %894 = vmatpush.msra.mxu0 %v352
    %895 = vmatpush.msra.mxu0 %v348
    %896 = vmatpush.msra.mxu0 %v344
    %897 = vmatpush.msra.mxu0 %v340
    %898 = vmatpush.msra.mxu0 %v336
    %899 = vmatpush.msra.mxu0 %v332
    %900 = vmatpush.msra.mxu0 %v328
    %901 = vmatpush.msra.mxu0 %v324
    %902 = vmatpush.msra.mxu0 %v320
    %903 = vmatpush.msra.mxu0 %v316
    %904 = vmatpush.msra.mxu0 %v312
    %905 = vmatpush.msra.mxu0 %v308
    %906 = vmatpush.msra.mxu0 %v304
    %907 = vmatpush.msra.mxu0 %v300
    %908 = vmatmul.f32.gmra.mxu0 %v444
    %v909 = vpop.f32.mrf.mxu0
    %v910 = vadd.f32 %v890, %v909
    %911 = vdwg.mxu0
    %912 = vmatpush.msra.mxu0 %v424
    %913 = vmatpush.msra.mxu0 %v420
    %914 = vmatpush.msra.mxu0 %v416
    %915 = vmatpush.msra.mxu0 %v412
    %916 = vmatpush.msra.mxu0 %v408
    %917 = vmatpush.msra.mxu0 %v404
    %918 = vmatpush.msra.mxu0 %v400
    %919 = vmatpush.msra.mxu0 %v396
    %920 = vmatpush.msra.mxu0 %v392
    %921 = vmatpush.msra.mxu0 %v388
    %922 = vmatpush.msra.mxu0 %v384
    %923 = vmatpush.msra.mxu0 %v380
    %924 = vmatpush.msra.mxu0 %v376
    %925 = vmatpush.msra.mxu0 %v372
    %926 = vmatpush.msra.mxu0 %v368
    %927 = vmatpush.msra.mxu0 %v364
    %928 = vmatmul.f32.gmra.mxu0 %v445
    %v929 = vpop.f32.mrf.mxu0
    %v930 = vadd.f32 %v910, %v929
    %931 = vdwg.mxu0
    %v932 = vmax.f32 %v570, 0.0
    %v933 = vmax.f32 %v690, 0.0
    %v934 = vmax.f32 %v810, 0.0
    %v935 = vmax.f32 %v930, 0.0
    %v936 = vld [vmem:[%s3] sm:$0xff]
    %v937 = vld [vmem:[%s3 + $0x8] sm:$0xff]
    %v938 = vld [vmem:[%s3 + $0x10] sm:$0xff]
    %v939 = vld [vmem:[%s3 + $0x18] sm:$0xff]
    %v940 = vld [vmem:[%s3 + $0x20] sm:$0xff]
    %v941 = vld [vmem:[%s3 + $0x28] sm:$0xff]
    %v942 = vld [vmem:[%s3 + $0x30] sm:$0xff]
    %v943 = vld [vmem:[%s3 + $0x38] sm:$0xff]
    %v944 = vld [vmem:[%s3 + $0x40] sm:$0xff]
    %v945 = vld [vmem:[%s3 + $0x48] sm:$0xff]
    %v946 = vld [vmem:[%s3 + $0x50] sm:$0xff]
    %v947 = vld [vmem:[%s3 + $0x58] sm:$0xff]
    %v948 = vld [vmem:[%s3 + $0x60] sm:$0xff]
    %v949 = vld [vmem:[%s3 + $0x68] sm:$0xff]
    %v950 = vld [vmem:[%s3 + $0x70] sm:$0xff]
    %v951 = vld [vmem:[%s3 + $0x78] sm:$0xff]
    %v952 = vld [vmem:[%s3 + $0x80] sm:$0xff]
    %v953 = vld [vmem:[%s3 + $0x88] sm:$0xff]
    %v954 = vld [vmem:[%s3 + $0x90] sm:$0xff]
    %v955 = vld [vmem:[%s3 + $0x98] sm:$0xff]
    %v956 = vld [vmem:[%s3 + $0xa0] sm:$0xff]
    %v957 = vld [vmem:[%s3 + $0xa8] sm:$0xff]
    %v958 = vld [vmem:[%s3 + $0xb0] sm:$0xff]
    %v959 = vld [vmem:[%s3 + $0xb8] sm:$0xff]
    %v960 = vld [vmem:[%s3 + $0xc0] sm:$0xff]
    %v961 = vld [vmem:[%s3 + $0xc8] sm:$0xff]
    %v962 = vld [vmem:[%s3 + $0xd0] sm:$0xff]
    %v963 = vld [vmem:[%s3 + $0xd8] sm:$0xff]
    %v964 = vld [vmem:[%s3 + $0xe0] sm:$0xff]
    %v965 = vld [vmem:[%s3 + $0xe8] sm:$0xff]
    %v966 = vld [vmem:[%s3 + $0xf0] sm:$0xff]
    %v967 = vld [vmem:[%s3 + $0xf8] sm:$0xff]
    %v968 = vld [vmem:[%s3 + $0x100] sm:$0xff]
    %v969 = vld [vmem:[%s3 + $0x108] sm:$0xff]
    %v970 = vld [vmem:[%s3 + $0x110] sm:$0xff]
    %v971 = vld [vmem:[%s3 + $0x118] sm:$0xff]
    %v972 = vld [vmem:[%s3 + $0x120] sm:$0xff]
    %v973 = vld [vmem:[%s3 + $0x128] sm:$0xff]
    %v974 = vld [vmem:[%s3 + $0x130] sm:$0xff]
    %v975 = vld [vmem:[%s3 + $0x138] sm:$0xff]
    %v976 = vld [vmem:[%s3 + $0x140] sm:$0xff]
    %v977 = vld [vmem:[%s3 + $0x148] sm:$0xff]
    %v978 = vld [vmem:[%s3 + $0x150] sm:$0xff]
    %v979 = vld [vmem:[%s3 + $0x158] sm:$0xff]
    %v980 = vld [vmem:[%s3 + $0x160] sm:$0xff]
    %v981 = vld [vmem:[%s3 + $0x168] sm:$0xff]
    %v982 = vld [vmem:[%s3 + $0x170] sm:$0xff]
    %v983 = vld [vmem:[%s3 + $0x178] sm:$0xff]
    %v984 = vld [vmem:[%s3 + $0x180] sm:$0xff]
    %v985 = vld [vmem:[%s3 + $0x188] sm:$0xff]
    %v986 = vld [vmem:[%s3 + $0x190] sm:$0xff]
    %v987 = vld [vmem:[%s3 + $0x198] sm:$0xff]
    %v988 = vld [vmem:[%s3 + $0x1a0] sm:$0xff]
    %v989 = vld [vmem:[%s3 + $0x1a8] sm:$0xff]
    %v990 = vld [vmem:[%s3 + $0x1b0] sm:$0xff]
    %v991 = vld [vmem:[%s3 + $0x1b8] sm:$0xff]
    %v992 = vld [vmem:[%s3 + $0x1c0] sm:$0xff]
    %v993 = vld [vmem:[%s3 + $0x1c8] sm:$0xff]
    %v994 = vld [vmem:[%s3 + $0x1d0] sm:$0xff]
    %v995 = vld [vmem:[%s3 + $0x1d8] sm:$0xff]
    %v996 = vld [vmem:[%s3 + $0x1e0] sm:$0xff]
    %v997 = vld [vmem:[%s3 + $0x1e8] sm:$0xff]
    %v998 = vld [vmem:[%s3 + $0x1f0] sm:$0xff]
    %v999 = vld [vmem:[%s3 + $0x1f8] sm:$0xff]
    %v1000 = vld [vmem:[%s3 + $0x200] sm:$0xff]
    %v1001 = vld [vmem:[%s3 + $0x208] sm:$0xff]
    %v1002 = vld [vmem:[%s3 + $0x210] sm:$0xff]
    %v1003 = vld [vmem:[%s3 + $0x218] sm:$0xff]
    %v1004 = vld [vmem:[%s3 + $0x220] sm:$0xff]
    %v1005 = vld [vmem:[%s3 + $0x228] sm:$0xff]
    %v1006 = vld [vmem:[%s3 + $0x230] sm:$0xff]
    %v1007 = vld [vmem:[%s3 + $0x238] sm:$0xff]
    %v1008 = vld [vmem:[%s3 + $0x240] sm:$0xff]
    %v1009 = vld [vmem:[%s3 + $0x248] sm:$0xff]
    %v1010 = vld [vmem:[%s3 + $0x250] sm:$0xff]
    %v1011 = vld [vmem:[%s3 + $0x258] sm:$0xff]
    %v1012 = vld [vmem:[%s3 + $0x260] sm:$0xff]
    %v1013 = vld [vmem:[%s3 + $0x268] sm:$0xff]
    %v1014 = vld [vmem:[%s3 + $0x270] sm:$0xff]
    %v1015 = vld [vmem:[%s3 + $0x278] sm:$0xff]
    %v1016 = vld [vmem:[%s3 + $0x280] sm:$0xff]
    %v1017 = vld [vmem:[%s3 + $0x288] sm:$0xff]
    %v1018 = vld [vmem:[%s3 + $0x290] sm:$0xff]
    %v1019 = vld [vmem:[%s3 + $0x298] sm:$0xff]
    %v1020 = vld [vmem:[%s3 + $0x2a0] sm:$0xff]
    %v1021 = vld [vmem:[%s3 + $0x2a8] sm:$0xff]
    %v1022 = vld [vmem:[%s3 + $0x2b0] sm:$0xff]
    %v1023 = vld [vmem:[%s3 + $0x2b8] sm:$0xff]
    %v1024 = vld [vmem:[%s3 + $0x2c0] sm:$0xff]
    %v1025 = vld [vmem:[%s3 + $0x2c8] sm:$0xff]
    %v1026 = vld [vmem:[%s3 + $0x2d0] sm:$0xff]
    %v1027 = vld [vmem:[%s3 + $0x2d8] sm:$0xff]
    %v1028 = vld [vmem:[%s3 + $0x2e0] sm:$0xff]
    %v1029 = vld [vmem:[%s3 + $0x2e8] sm:$0xff]
    %v1030 = vld [vmem:[%s3 + $0x2f0] sm:$0xff]
    %v1031 = vld [vmem:[%s3 + $0x2f8] sm:$0xff]
    %v1032 = vld [vmem:[%s3 + $0x300] sm:$0xff]
    %v1033 = vld [vmem:[%s3 + $0x308] sm:$0xff]
    %s1034 = scalar_lea.vmem %s10, 1
    %v1035 = vld [vmem:[%s1034] ss:$8 sm:$0x3]
    %v1037 = vperm.slane %v1035, 0
    %v1038 = vperm.slane %v1035, 1
    %vm1041 = vcmask 64512
    %v1043 = vsel %vm1041, %v935, 0
    %1045 = vmatpush.msra.mxu0 %v966
    %1046 = vmatpush.msra.mxu0 %v964
    %1047 = vmatpush.msra.mxu0 %v962
    %1048 = vmatpush.msra.mxu0 %v960
    %1049 = vmatpush.msra.mxu0 %v958
    %1050 = vmatpush.msra.mxu0 %v956
    %1051 = vmatpush.msra.mxu0 %v954
    %1052 = vmatpush.msra.mxu0 %v952
    %1053 = vmatpush.msra.mxu0 %v950
    %1054 = vmatpush.msra.mxu0 %v948
    %1055 = vmatpush.msra.mxu0 %v946
    %1056 = vmatpush.msra.mxu0 %v944
    %1057 = vmatpush.msra.mxu0 %v942
    %1058 = vmatpush.msra.mxu0 %v940
    %1059 = vmatpush.msra.mxu0 %v938
    %1060 = vmatpush.msra.mxu0 %v936
    %1061 = vmatmul.f32.gmra.mxu0 %v932
    %v1062 = vpop.f32.mrf.mxu0
    %v1063 = vadd.f32 %v1037, %v1062
    %1064 = vdwg.mxu0
    %1065 = vmatpush.msra.mxu0 %v998
    %1066 = vmatpush.msra.mxu0 %v996
    %1067 = vmatpush.msra.mxu0 %v994
    %1068 = vmatpush.msra.mxu0 %v992
    %1069 = vmatpush.msra.mxu0 %v990
    %1070 = vmatpush.msra.mxu0 %v988
    %1071 = vmatpush.msra.mxu0 %v986
    %1072 = vmatpush.msra.mxu0 %v984
    %1073 = vmatpush.msra.mxu0 %v982
    %1074 = vmatpush.msra.mxu0 %v980
    %1075 = vmatpush.msra.mxu0 %v978
    %1076 = vmatpush.msra.mxu0 %v976
    %1077 = vmatpush.msra.mxu0 %v974
    %1078 = vmatpush.msra.mxu0 %v972
    %1079 = vmatpush.msra.mxu0 %v970
    %1080 = vmatpush.msra.mxu0 %v968
    %1081 = vmatmul.f32.gmra.mxu0 %v933
    %v1082 = vpop.f32.mrf.mxu0
    %v1083 = vadd.f32 %v1063, %v1082
    %1084 = vdwg.mxu0
    %1085 = vmatpush.msra.mxu0 %v1030
    %1086 = vmatpush.msra.mxu0 %v1028
    %1087 = vmatpush.msra.mxu0 %v1026
    %1088 = vmatpush.msra.mxu0 %v1024
    %1089 = vmatpush.msra.mxu0 %v1022
    %1090 = vmatpush.msra.mxu0 %v1020
    %1091 = vmatpush.msra.mxu0 %v1018
    %1092 = vmatpush.msra.mxu0 %v1016
    %1093 = vmatpush.msra.mxu0 %v1014
    %1094 = vmatpush.msra.mxu0 %v1012
    %1095 = vmatpush.msra.mxu0 %v1010
    %1096 = vmatpush.msra.mxu0 %v1008
    %1097 = vmatpush.msra.mxu0 %v1006
    %1098 = vmatpush.msra.mxu0 %v1004
    %1099 = vmatpush.msra.mxu0 %v1002
    %1100 = vmatpush.msra.mxu0 %v1000
    %1101 = vmatmul.f32.gmra.mxu0 %v934
    %v1102 = vpop.f32.mrf.mxu0
    %v1103 = vadd.f32 %v1083, %v1102
    %1104 = vdwg.mxu0
    %1105 = vmatpush.msra.mxu0 0.0
    %1106 = vmatpush.msra.mxu0 0.0
    %1107 = vmatpush.msra.mxu0 0.0
    %1108 = vmatpush.msra.mxu0 0.0
    %1109 = vmatpush.msra.mxu0 0.0
    %1110 = vmatpush.msra.mxu0 0.0
    %1111 = vmatpush.msra.mxu0 0.0
    %1112 = vmatpush.msra.mxu0 0.0
    %1113 = vmatpush.msra.mxu0 0.0
    %1114 = vmatpush.msra.mxu0 0.0
    %1115 = vmatpush.msra.mxu0 0.0
    %1116 = vmatpush.msra.mxu0 0.0
    %1117 = vmatpush.msra.mxu0 0.0
    %1118 = vmatpush.msra.mxu0 0.0
    %1119 = vmatpush.msra.mxu0 0.0
    %1120 = vmatpush.msra.mxu0 %v1032
    %1121 = vmatmul.f32.gmra.mxu0 %v1043
    %v1122 = vpop.f32.mrf.mxu0
    %v1123 = vadd.f32 %v1103, %v1122
    %1124 = vdwg.mxu0
    %1125 = vmatpush.msra.mxu0 %v967
    %1126 = vmatpush.msra.mxu0 %v965
    %1127 = vmatpush.msra.mxu0 %v963
    %1128 = vmatpush.msra.mxu0 %v961
    %1129 = vmatpush.msra.mxu0 %v959
    %1130 = vmatpush.msra.mxu0 %v957
    %1131 = vmatpush.msra.mxu0 %v955
    %1132 = vmatpush.msra.mxu0 %v953
    %1133 = vmatpush.msra.mxu0 %v951
    %1134 = vmatpush.msra.mxu0 %v949
    %1135 = vmatpush.msra.mxu0 %v947
    %1136 = vmatpush.msra.mxu0 %v945
    %1137 = vmatpush.msra.mxu0 %v943
    %1138 = vmatpush.msra.mxu0 %v941
    %1139 = vmatpush.msra.mxu0 %v939
    %1140 = vmatpush.msra.mxu0 %v937
    %1141 = vmatmul.f32.gmra.mxu0 %v932
    %v1142 = vpop.f32.mrf.mxu0
    %v1143 = vadd.f32 %v1038, %v1142
    %1144 = vdwg.mxu0
    %1145 = vmatpush.msra.mxu0 %v999
    %1146 = vmatpush.msra.mxu0 %v997
    %1147 = vmatpush.msra.mxu0 %v995
    %1148 = vmatpush.msra.mxu0 %v993
    %1149 = vmatpush.msra.mxu0 %v991
    %1150 = vmatpush.msra.mxu0 %v989
    %1151 = vmatpush.msra.mxu0 %v987
    %1152 = vmatpush.msra.mxu0 %v985
    %1153 = vmatpush.msra.mxu0 %v983
    %1154 = vmatpush.msra.mxu0 %v981
    %1155 = vmatpush.msra.mxu0 %v979
    %1156 = vmatpush.msra.mxu0 %v977
    %1157 = vmatpush.msra.mxu0 %v975
    %1158 = vmatpush.msra.mxu0 %v973
    %1159 = vmatpush.msra.mxu0 %v971
    %1160 = vmatpush.msra.mxu0 %v969
    %1161 = vmatmul.f32.gmra.mxu0 %v933
    %v1162 = vpop.f32.mrf.mxu0
    %v1163 = vadd.f32 %v1143, %v1162
    %1164 = vdwg.mxu0
    %1165 = vmatpush.msra.mxu0 %v1031
    %1166 = vmatpush.msra.mxu0 %v1029
    %1167 = vmatpush.msra.mxu0 %v1027
    %1168 = vmatpush.msra.mxu0 %v1025
    %1169 = vmatpush.msra.mxu0 %v1023
    %1170 = vmatpush.msra.mxu0 %v1021
    %1171 = vmatpush.msra.mxu0 %v1019
    %1172 = vmatpush.msra.mxu0 %v1017
    %1173 = vmatpush.msra.mxu0 %v1015
    %1174 = vmatpush.msra.mxu0 %v1013
    %1175 = vmatpush.msra.mxu0 %v1011
    %1176 = vmatpush.msra.mxu0 %v1009
    %1177 = vmatpush.msra.mxu0 %v1007
    %1178 = vmatpush.msra.mxu0 %v1005
    %1179 = vmatpush.msra.mxu0 %v1003
    %1180 = vmatpush.msra.mxu0 %v1001
    %1181 = vmatmul.f32.gmra.mxu0 %v934
    %v1182 = vpop.f32.mrf.mxu0
    %v1183 = vadd.f32 %v1163, %v1182
    %1184 = vdwg.mxu0
    %1185 = vmatpush.msra.mxu0 0.0
    %1186 = vmatpush.msra.mxu0 0.0
    %1187 = vmatpush.msra.mxu0 0.0
    %1188 = vmatpush.msra.mxu0 0.0
    %1189 = vmatpush.msra.mxu0 0.0
    %1190 = vmatpush.msra.mxu0 0.0
    %1191 = vmatpush.msra.mxu0 0.0
    %1192 = vmatpush.msra.mxu0 0.0
    %1193 = vmatpush.msra.mxu0 0.0
    %1194 = vmatpush.msra.mxu0 0.0
    %1195 = vmatpush.msra.mxu0 0.0
    %1196 = vmatpush.msra.mxu0 0.0
    %1197 = vmatpush.msra.mxu0 0.0
    %1198 = vmatpush.msra.mxu0 0.0
    %1199 = vmatpush.msra.mxu0 0.0
    %1200 = vmatpush.msra.mxu0 %v1033
    %1201 = vmatmul.f32.gmra.mxu0 %v1043
    %v1202 = vpop.f32.mrf.mxu0
    %v1203 = vadd.f32 %v1183, %v1202
    %1204 = vdwg.mxu0
    %v1205 = vmax.f32 %v1123, 0.0
    %v1206 = vmax.f32 %v1203, 0.0
    %v1207 = vld [vmem:[%s4] sm:$0xff]
    %v1208 = vld [vmem:[%s4 + $0x8] sm:$0xff]
    %v1209 = vld [vmem:[%s4 + $0x10] sm:$0xff]
    %v1210 = vld [vmem:[%s4 + $0x18] sm:$0xff]
    %v1211 = vld [vmem:[%s4 + $0x20] sm:$0xff]
    %v1212 = vld [vmem:[%s4 + $0x28] sm:$0xff]
    %v1213 = vld [vmem:[%s4 + $0x30] sm:$0xff]
    %v1214 = vld [vmem:[%s4 + $0x38] sm:$0xff]
    %v1215 = vld [vmem:[%s4 + $0x40] sm:$0xff]
    %v1216 = vld [vmem:[%s4 + $0x48] sm:$0xff]
    %v1217 = vld [vmem:[%s4 + $0x50] sm:$0xff]
    %v1218 = vld [vmem:[%s4 + $0x58] sm:$0xff]
    %v1219 = vld [vmem:[%s4 + $0x60] sm:$0xff]
    %v1220 = vld [vmem:[%s4 + $0x68] sm:$0xff]
    %v1221 = vld [vmem:[%s4 + $0x70] sm:$0xff]
    %v1222 = vld [vmem:[%s4 + $0x78] sm:$0xff]
    %v1223 = vld [vmem:[%s4 + $0x80] sm:$0xff]
    %v1224 = vld [vmem:[%s4 + $0x88] sm:$0xff]
    %v1225 = vld [vmem:[%s10 + $0x2] ss:$0 sm:$0xff]
    %vm1226 = vcmask 130048
    %v1228 = vsel %vm1226, %v1206, 0
    %1230 = vmatpush.msra.mxu0 %v1222
    %1231 = vmatpush.msra.mxu0 %v1221
    %1232 = vmatpush.msra.mxu0 %v1220
    %1233 = vmatpush.msra.mxu0 %v1219
    %1234 = vmatpush.msra.mxu0 %v1218
    %1235 = vmatpush.msra.mxu0 %v1217
    %1236 = vmatpush.msra.mxu0 %v1216
    %1237 = vmatpush.msra.mxu0 %v1215
    %1238 = vmatpush.msra.mxu0 %v1214
    %1239 = vmatpush.msra.mxu0 %v1213
    %1240 = vmatpush.msra.mxu0 %v1212
    %1241 = vmatpush.msra.mxu0 %v1211
    %1242 = vmatpush.msra.mxu0 %v1210
    %1243 = vmatpush.msra.mxu0 %v1209
    %1244 = vmatpush.msra.mxu0 %v1208
    %1245 = vmatpush.msra.mxu0 %v1207
    %1246 = vmatmul.f32.gmra.mxu0 %v1205
    %v1247 = vpop.f32.mrf.mxu0
    %v1248 = vadd.f32 %v1225, %v1247
    %1249 = vdwg.mxu0
    %1250 = vmatpush.msra.mxu0 0.0
    %1251 = vmatpush.msra.mxu0 0.0
    %1252 = vmatpush.msra.mxu0 0.0
    %1253 = vmatpush.msra.mxu0 0.0
    %1254 = vmatpush.msra.mxu0 0.0
    %1255 = vmatpush.msra.mxu0 0.0
    %1256 = vmatpush.msra.mxu0 0.0
    %1257 = vmatpush.msra.mxu0 0.0
    %1258 = vmatpush.msra.mxu0 0.0
    %1259 = vmatpush.msra.mxu0 0.0
    %1260 = vmatpush.msra.mxu0 0.0
    %1261 = vmatpush.msra.mxu0 0.0
    %1262 = vmatpush.msra.mxu0 0.0
    %1263 = vmatpush.msra.mxu0 0.0
    %1264 = vmatpush.msra.mxu0 %v1224
    %1265 = vmatpush.msra.mxu0 %v1223
    %1266 = vmatmul.f32.gmra.mxu0 %v1228
    %v1267 = vpop.f32.mrf.mxu0
    %v1268 = vadd.f32 %v1248, %v1267
    %1269 = vdwg.mxu0
    %v1270 = vmax.f32 %v1268, 0.0
    %v1271 = vld [vmem:[%s1] sm:$0x3]
    %v1272 = vld [vmem:[%s5] sm:$0x1]
    %1274 = vset.pattern.permute.xlu0 0
    %1275 = vperm.xlu0 %1274, %v1271
    %v1276 = vpop.permute.xlu0 %1275
    %v1279 = vperm.slane %v1272, 0
    %v1281 = vmul.f32 %v1276, %v1279
    %v1282 = vld [vmem:[%s10 + $0x3] ss:$0 sm:$0xff]
    %v1283 = vadd.f32 %v1281, %v1282
    %v1284 = vmax.f32 %v1283, 0.0
    %v1285 = vld [vmem:[%s6] sm:$0xff]
    %v1286 = vld [vmem:[%s6 + $0x8] sm:$0xff]
    %v1287 = vld [vmem:[%s6 + $0x10] sm:$0xff]
    %v1288 = vld [vmem:[%s6 + $0x18] sm:$0xff]
    %v1289 = vld [vmem:[%s7] sm:$0xff]
    %v1290 = vld [vmem:[%s7 + $0x8] sm:$0xff]
    %v1292 = vsel %vm1226, %v1284, 0
    %1294 = vmatpush.msra.mxu0 0.0
    %1295 = vmatpush.msra.mxu0 0.0
    %1296 = vmatpush.msra.mxu0 0.0
    %1297 = vmatpush.msra.mxu0 0.0
    %1298 = vmatpush.msra.mxu0 0.0
    %1299 = vmatpush.msra.mxu0 0.0
    %1300 = vmatpush.msra.mxu0 0.0
    %1301 = vmatpush.msra.mxu0 0.0
    %1302 = vmatpush.msra.mxu0 0.0
    %1303 = vmatpush.msra.mxu0 0.0
    %1304 = vmatpush.msra.mxu0 0.0
    %1305 = vmatpush.msra.mxu0 0.0
    %1306 = vmatpush.msra.mxu0 0.0
    %1307 = vmatpush.msra.mxu0 0.0
    %1308 = vmatpush.msra.mxu0 %v1290
    %1309 = vmatpush.msra.mxu0 %v1289
    %1310 = vmatmul.f32.gmra.mxu0 %v1292
    %v1311 = vpop.f32.mrf.mxu0
    %v1312 = vadd.f32 0.0, %v1311
    %1313 = vdwg.mxu0
    %vm1314 = vcmask 261120
    %v1316 = vsel %vm1314, %v1270, 0
    %1318 = vmatpush.msra.mxu0 0.0
    %1319 = vmatpush.msra.mxu0 0.0
    %1320 = vmatpush.msra.mxu0 0.0
    %1321 = vmatpush.msra.mxu0 0.0
    %1322 = vmatpush.msra.mxu0 0.0
    %1323 = vmatpush.msra.mxu0 0.0
    %1324 = vmatpush.msra.mxu0 0.0
    %1325 = vmatpush.msra.mxu0 0.0
    %1326 = vmatpush.msra.mxu0 0.0
    %1327 = vmatpush.msra.mxu0 0.0
    %1328 = vmatpush.msra.mxu0 0.0
    %1329 = vmatpush.msra.mxu0 0.0
    %1330 = vmatpush.msra.mxu0 %v1288
    %1331 = vmatpush.msra.mxu0 %v1287
    %1332 = vmatpush.msra.mxu0 %v1286
    %1333 = vmatpush.msra.mxu0 %v1285
    %1334 = vmatmul.f32.gmra.mxu0 %v1316
    %v1335 = vpop.f32.mrf.mxu0
    %v1336 = vadd.f32 %v1312, %v1335
    %1337 = vdwg.mxu0
    %v1338 = vld [vmem:[%s10 + $0x4] ss:$0 sm:$0xff]
    %v1339 = vadd.f32 %v1336, %v1338
    %v1340 = vmax.f32 %v1339, 0.0
    %v1341 = vld [vmem:[%s8] sm:$0xff]
    %v1342 = vld [vmem:[%s8 + $0x8] sm:$0xff]
    %v1343 = vld [vmem:[%s8 + $0x10] sm:$0xff]
    %v1344 = vld [vmem:[%s8 + $0x18] sm:$0xff]
    %v1345 = vld [vmem:[%s10 + $0x5] ss:$0 sm:$0xff]
    %v1347 = vsel %vm1314, %v1340, 0
    %1349 = vmatpush.msra.mxu0 0.0
    %1350 = vmatpush.msra.mxu0 0.0
    %1351 = vmatpush.msra.mxu0 0.0
    %1352 = vmatpush.msra.mxu0 0.0
    %1353 = vmatpush.msra.mxu0 0.0
    %1354 = vmatpush.msra.mxu0 0.0
    %1355 = vmatpush.msra.mxu0 0.0
    %1356 = vmatpush.msra.mxu0 0.0
    %1357 = vmatpush.msra.mxu0 0.0
    %1358 = vmatpush.msra.mxu0 0.0
    %1359 = vmatpush.msra.mxu0 0.0
    %1360 = vmatpush.msra.mxu0 0.0
    %1361 = vmatpush.msra.mxu0 %v1344
    %1362 = vmatpush.msra.mxu0 %v1343
    %1363 = vmatpush.msra.mxu0 %v1342
    %1364 = vmatpush.msra.mxu0 %v1341
    %1365 = vmatmul.f32.gmra.mxu0 %v1347
    %v1366 = vpop.f32.mrf.mxu0
    %v1367 = vadd.f32 %v1345, %v1366
    %1368 = vdwg.mxu0
    %v1369 = vmax.f32 %v1367, 0.0
    %v1370 = vld [vmem:[%s9] sm:$0xff]
    %v1371 = vld [vmem:[%s9 + $0x8] sm:$0xff]
    %v1372 = vld [vmem:[%s9 + $0x10] sm:$0xff]
    %v1373 = vld [vmem:[%s9 + $0x18] sm:$0xff]
    %v1374 = vld [vmem:[%s10 + $0x6] ss:$0 sm:$0xff]
    %v1376 = vsel %vm1314, %v1369, 0
    %1378 = vmatpush.msra.mxu0 0.0
    %1379 = vmatpush.msra.mxu0 0.0
    %1380 = vmatpush.msra.mxu0 0.0
    %1381 = vmatpush.msra.mxu0 0.0
    %1382 = vmatpush.msra.mxu0 0.0
    %1383 = vmatpush.msra.mxu0 0.0
    %1384 = vmatpush.msra.mxu0 0.0
    %1385 = vmatpush.msra.mxu0 0.0
    %1386 = vmatpush.msra.mxu0 0.0
    %1387 = vmatpush.msra.mxu0 0.0
    %1388 = vmatpush.msra.mxu0 0.0
    %1389 = vmatpush.msra.mxu0 0.0
    %1390 = vmatpush.msra.mxu0 %v1373
    %1391 = vmatpush.msra.mxu0 %v1372
    %1392 = vmatpush.msra.mxu0 %v1371
    %1393 = vmatpush.msra.mxu0 %v1370
    %1394 = vmatmul.f32.gmra.mxu0 %v1376
    %v1395 = vpop.f32.mrf.mxu0
    %v1396 = vadd.f32 %v1374, %v1395
    %1397 = vdwg.mxu0
    %vm1398 = vcmask 9216
    %1399 = vst.msk [vmem:[#allocation2] sm:$0x3] %vm1398, %v1396
    // Predicated region
    $region46: #{cil_forward.1} parent=1 // pred_check
      _
    $region47: #{cil_forward.1} parent=1 // pred_check_branch
      %1401 = sbr.rel (0) target = $region49
    $region48: #{cil_forward.1} parent=1 // pred_region
      %1403 = vsyncadd [#allocation3], 0
      %s1405 = sshll.u32 [#allocation2], 4
      %s1406 = int_to_ptr.vmem [resolvable:$true] %s1405
      %s1407 = sshll.u32 %s11, 4
      %s1408 = int_to_ptr.hbm [resolvable:$true] %s1407
      %1410 = dma.vmem_to_hbm [thread:$0]  %s1406, 32, %s1408, [#allocation3]
    $region49: #{cil_forward.1} parent=1 // pred_fallthru
      _
    // Predicated region
    $region50: #{cil_forward.1} parent=1 // pred_check
      _
    $region51: #{cil_forward.1} parent=1 // pred_check_branch
      %1412 = sbr.rel (0) target = $region53
    $region52: #{cil_forward.1} parent=1 // pred_region
      %1414 = dma.done [#allocation3], 32
    $region53: #{cil_forward.1} parent=1 // pred_fallthru
      _
    %1415 = vsyncpa [#allocation3], 1

</llo_original>
